<compile_context>
chip_gen: v6e
topology: v6e:2x2x1
jax: 0.10.0
libtpu: 0.0.40
codegen_flags: <defaults>
</compile_context>

<pallas_src>
import math
import functools

import numpy as np
import jax
import jax.numpy as jnp
from jax.experimental import pallas as pl
from jax.experimental.pallas import tpu as pltpu


# ----------------------------------------------------------------------------
# Kernels
# ----------------------------------------------------------------------------

def _pos_grid_kernel(yx_ref, const_ref, out_ref, *, half):
    # yx_ref:    (2, t)    f32 : row 0 = y_embed, row 1 = x_embed (flat n=h*W+w)
    # const_ref: (2, C, 1) f32 : row 0 = 1/dim_t per channel, row 1 = sin phase
    # out_ref:   (C, t)        : channels-first, lane-dense tile of the flat grid
    y = yx_ref[0:1, :]                        # (1, t)
    x = yx_ref[1:2, :]                        # (1, t)
    mul = const_ref[0]                        # (C, 1)
    ph = const_ref[1]                         # (C, 1)
    # cos(v) == sin(v + pi/2): one VPU sin polynomial per element instead of two.
    out_ref[:half, :] = jnp.sin(y * mul[:half] + ph[:half]).astype(out_ref.dtype)
    out_ref[half:, :] = jnp.sin(x * mul[half:] + ph[half:]).astype(out_ref.dtype)


def _cumsum_kernel(mask_ref, ly_ref, ux_ref, yx_ref, *,
                   normalize, scale, offset, eps):
    # mask_ref: (H, W)    bf16 (0/1)
    # ly_ref:   (H, H)    bf16 lower-triangular (incl. diag) -> cumsum over H
    # ux_ref:   (W, W)    bf16 upper-triangular (incl. diag) -> cumsum over W
    # yx_ref:   (2, H, W) f32  : [0] = y_embed, [1] = x_embed for this batch
    m = mask_ref[...]
    H = m.shape[0]
    W = m.shape[1]
    # Cumulative sums as MXU matmuls (exact: 0/1 bf16 inputs, f32 accumulation).
    # TODO(synk): for large B, batch these tiny per-batch MXU pushes into
    #             Ly @ [H, B*W] and [B*H, W] @ Ux full-width passes (secondary
    #             win -- the sin generator dominates total cost).
    y_embed = jnp.dot(ly_ref[...], m, preferred_element_type=jnp.float32)   # (H, W)
    x_embed = jnp.dot(m, ux_ref[...], preferred_element_type=jnp.float32)   # (H, W)
    if normalize:
        y_embed = (y_embed + offset) * (scale / (y_embed[H - 1:H, :] + eps))
        x_embed = (x_embed + offset) * (scale / (x_embed[:, W - 1:W] + eps))
    yx_ref[0] = y_embed
    yx_ref[1] = x_embed


# ----------------------------------------------------------------------------
# Cached host-side constants (device arrays; no per-call numpy / H2D traffic)
# ----------------------------------------------------------------------------

@functools.lru_cache(maxsize=None)
def _channel_consts(P, temperature):
    k = np.arange(P, dtype=np.float64)
    dim_t = np.float64(temperature) ** (2.0 * np.floor(k / 2.0) / P)
    inv = 1.0 / dim_t                                  # multiply, never divide, in-kernel
    phase = np.where(k % 2 == 0, 0.0, np.pi / 2.0)     # sin for even ch, cos for odd ch
    mul = np.concatenate([inv, inv])                   # y-half then x-half
    ph = np.concatenate([phase, phase])
    arr = np.stack([mul, ph]).astype(np.float32)[:, :, None]   # (2, 2P, 1)
    return jnp.asarray(arr)


@functools.lru_cache(maxsize=None)
def _flat_grid(H, W, normalize, scale, offset, eps):
    # Unmasked path: cumsum of an all-ones mask is just (index + 1).
    yi = np.repeat(np.arange(H, dtype=np.float64), W)   # flat index n = h*W + w
    xi = np.tile(np.arange(W, dtype=np.float64), H)
    y_emb = yi + 1.0
    x_emb = xi + 1.0
    if normalize:
        y_emb = (y_emb + offset) / (H + eps) * scale
        x_emb = (x_emb + offset) / (W + eps) * scale
    yx = np.stack([y_emb, x_emb]).astype(np.float32)[None]     # (1, 2, H*W)
    return jnp.asarray(yx)


@functools.lru_cache(maxsize=None)
def _tri_mats(H, W):
    ri = np.arange(H)
    rj = np.arange(W)
    ly = (ri[:, None] >= ri[None, :]).astype(np.float32)       # (H, H) lower-tri incl diag
    ux = (rj[:, None] <= rj[None, :]).astype(np.float32)       # (W, W) upper-tri incl diag
    return (jnp.asarray(ly, dtype=jnp.bfloat16),
            jnp.asarray(ux, dtype=jnp.bfloat16))


def _pick_lane_tile(hw, c):
    # Lane-dense tiles: take the whole flat spatial axis when it fits under a
    # ~4 MiB/block cap (fewer, bigger tiles amortize per-grid-step overhead on
    # the sequential grid); otherwise the largest 128-multiple divisor under
    # the cap.  No two-TensorCore halving: plain "parallel" does not core-shard.
    if hw % 128 != 0:
        return hw                        # single full-width block (always legal)
    cap = max(128, ((4 << 20) // (4 * c)) // 128 * 128)
    t = min(hw, cap)
    while hw % t != 0:
        t -= 128
    return t


# ----------------------------------------------------------------------------
# pallas_call wrappers
# ----------------------------------------------------------------------------

def _generate(yx, consts, *, C, P, HW, out_dtype=jnp.float32):
    """yx: (Bg, 2, HW) f32 -> (Bg, C, HW) lane-dense sine/cos embedding."""
    Bg = yx.shape[0]
    t_hw = _pick_lane_tile(HW, C)
    n_hw = HW // t_hw

    kernel = functools.partial(_pos_grid_kernel, half=P)

    cp_kwargs = dict(dimension_semantics=("parallel", "parallel"))
    # Double-buffered output + yx blocks; raise the scoped VMEM limit only for
    # very large single-block cases (e.g. huge H*W that is not 128-divisible)
    # so v5e's 16 MiB default still compiles.
    need = 2 * 4 * (C + 2) * t_hw + 4 * 2 * C + (1 << 20)
    if need > (12 << 20):
        cp_kwargs["vmem_limit_bytes"] = int(need + (4 << 20))
    # TODO(synk): for very large unaligned H*W with big C, also tile over C
    #             (half-aligned channel tiles) instead of one full-width block.

    return pl.pallas_call(
        kernel,
        out_shape=jax.ShapeDtypeStruct((Bg, C, HW), out_dtype),
        grid_spec=pltpu.PrefetchScalarGridSpec(
            num_scalar_prefetch=0,
            grid=(Bg, n_hw),
            in_specs=[
                pl.BlockSpec((None, 2, t_hw), lambda b, j: (b, 0, j)),
                pl.BlockSpec((2, C, 1), lambda b, j: (0, 0, 0)),   # resident consts
            ],
            out_specs=pl.BlockSpec((None, C, t_hw), lambda b, j: (b, 0, j)),
        ),
        compiler_params=pltpu.CompilerParams(**cp_kwargs),
    )(yx, consts)


def _masked_cumsum(mask_bf16, ly, ux, *, normalize, scale, offset, eps):
    """mask: (B, H, W) bf16 0/1 -> (B, 2, H, W) f32 cumulative sums (+norm)."""
    B, H, W = mask_bf16.shape
    kernel = functools.partial(_cumsum_kernel, normalize=normalize,
                               scale=scale, offset=offset, eps=eps)
    return pl.pallas_call(
        kernel,
        out_shape=jax.ShapeDtypeStruct((B, 2, H, W), jnp.float32),
        grid_spec=pltpu.PrefetchScalarGridSpec(
            num_scalar_prefetch=0,
            grid=(B,),
            in_specs=[
                pl.BlockSpec((None, H, W), lambda b: (b, 0, 0)),
                pl.BlockSpec((H, H), lambda b: (0, 0)),            # hoisted, resident
                pl.BlockSpec((W, W), lambda b: (0, 0)),            # hoisted, resident
            ],
            out_specs=pl.BlockSpec((None, 2, H, W), lambda b: (b, 0, 0, 0)),
        ),
        compiler_params=pltpu.CompilerParams(dimension_semantics=("parallel",)),
    )(mask_bf16, ly, ux)


# ----------------------------------------------------------------------------
# Public wrapper (mirrors PositionEmbeddingSineGrid.forward)
# ----------------------------------------------------------------------------

def position_embedding_sine_grid(x, mask=None, *, num_pos_feats=64, temperature=10000,
                                 normalize=False, scale=None, offset=0.0, eps=1e-6,
                                 time_broadcast=True, out_dtype=jnp.float32):
    """x: (B, T, H, W, C) with C == 2*(num_pos_feats//2); mask: optional (B, H, W).

    Returns the DETR-style sine grid position embedding, shape (B, T, C, H, W).
    With time_broadcast=False returns (B, 1, C, H, W) instead: the embedding is
    T-independent, so skipping the repeat avoids materializing T extra HBM
    copies (the dominant memory cost); consumers can broadcast for free.
    """
    B, T, H, W, C = x.shape
    P = num_pos_feats // 2
    assert C == 2 * P, f"expected last dim {2 * P}, got {C}"
    if scale is not None and not normalize:
        raise ValueError("normalize should be True if scale is passed")
    if scale is None:
        scale = 2.0 * math.pi
    scale = float(scale)
    offset = float(offset)
    eps = float(eps)
    t_out = T if time_broadcast else 1
    HW = H * W

    consts = _channel_consts(P, float(temperature))            # (2, C, 1) f32, cached

    if mask is None:
        # ---- default path: pure generator, batch-independent, no mask DMA ----
        yx = _flat_grid(H, W, bool(normalize), scale, offset, eps)       # (1, 2, HW)
        pos_flat = _generate(yx, consts, C=C, P=P, HW=HW, out_dtype=out_dtype)
        pos = pos_flat.reshape(C, H, W)                        # row-major reshape
        # Broadcast over batch/time (identical values); T repeat only on request.
        return jnp.broadcast_to(pos[None, None], (B, t_out, C, H, W))

    # ---- masked path: per-batch cumsums via triangular matmuls, then the same
    #      lane-dense generator on the flattened (B, 2, H*W) embedding values ----
    # NOTE: non-binary masks would be bf16-quantized; all-padding rows/columns
    #       divide by eps under normalize (same behavior as the PyTorch module).
    mask_bf16 = jnp.asarray(mask).astype(jnp.bfloat16)
    ly, ux = _tri_mats(H, W)
    yx = _masked_cumsum(mask_bf16, ly, ux, normalize=bool(normalize),
                        scale=scale, offset=offset, eps=eps)             # (B, 2, H, W)
    pos_flat = _generate(yx.reshape(B, 2, HW), consts, C=C, P=P, HW=HW,
                         out_dtype=out_dtype)                            # (B, C, HW)
    pos = pos_flat.reshape(B, C, H, W)                          # row-major reshape
    return jnp.broadcast_to(pos[:, None], (B, t_out, C, H, W))


# ----------------------------------------------------------------------------
# Pure-JAX reference mirroring the PyTorch forward (for correctness checks)
# ----------------------------------------------------------------------------

def _reference(x, mask=None, *, num_pos_feats=64, temperature=10000,
               normalize=False, scale=None, offset=0.0, eps=1e-6):
    B, T, H, W, C = x.shape
    P = num_pos_feats // 2
    if scale is None:
        scale = 2.0 * math.pi
    if mask is None:
        mask = jnp.ones((B, H, W), dtype=jnp.float32)
    mask = mask.astype(jnp.float32)
    y_embed = jnp.cumsum(mask, axis=1)
    x_embed = jnp.cumsum(mask, axis=2)
    if normalize:
        y_embed = (y_embed + offset) / (y_embed[:, -1:, :] + eps) * scale
        x_embed = (x_embed + offset) / (x_embed[:, :, -1:] + eps) * scale
    dim_t = jnp.arange(P, dtype=jnp.float32)
    dim_t = temperature ** (2.0 * jnp.floor(dim_t / 2.0) / P)
    pos_x = x_embed[:, :, :, None] / dim_t
    pos_y = y_embed[:, :, :, None] / dim_t
    pos_x = jnp.stack((jnp.sin(pos_x[..., 0::2]), jnp.cos(pos_x[..., 1::2])),
                      axis=4).reshape(B, H, W, P)
    pos_y = jnp.stack((jnp.sin(pos_y[..., 0::2]), jnp.cos(pos_y[..., 1::2])),
                      axis=4).reshape(B, H, W, P)
    pos = jnp.concatenate((pos_y, pos_x), axis=3).transpose(0, 3, 1, 2)
    return jnp.broadcast_to(pos[:, None], (B, T, C, H, W))


if __name__ == "__main__":
    key = jax.random.PRNGKey(0)
    B, T, H, W = 2, 3, 16, 16
    num_pos_feats = 64                       # module default -> C = 64
    C = num_pos_feats
    x = jax.random.normal(key, (B, T, H, W, C), dtype=jnp.float32)

    # 1) default path: no mask, no normalization
    out = position_embedding_sine_grid(x, mask=None, num_pos_feats=num_pos_feats)
    out = jax.block_until_ready(out)
    ref = _reference(x, mask=None, num_pos_feats=num_pos_feats)
    assert out.shape == (B, T, C, H, W), out.shape
    assert jnp.allclose(out, ref, atol=1e-4, rtol=1e-4), "unmasked path mismatch"

    # 2) masked + normalized path (padding-style mask; no all-zero rows/cols)
    mask_np = np.ones((B, H, W), dtype=np.float32)
    mask_np[0, H // 2:, W // 2:] = 0.0
    mask_np[1, :H // 2, :W // 3] = 0.0
    mask = jnp.asarray(mask_np > 0.5)        # bool, like the PyTorch module
    out_m = position_embedding_sine_grid(x, mask=mask, num_pos_feats=num_pos_feats,
                                         normalize=True, scale=2.0 * math.pi, offset=0.5)
    out_m = jax.block_until_ready(out_m)
    ref_m = _reference(x, mask=mask, num_pos_feats=num_pos_feats,
                       normalize=True, scale=2.0 * math.pi, offset=0.5)
    assert out_m.shape == (B, T, C, H, W), out_m.shape
    assert jnp.allclose(out_m, ref_m, atol=1e-4, rtol=1e-4), "masked path mismatch"

    print("KERNEL_OK")
</pallas_src>

<mosaic_0001>
module attributes {stable_mosaic.version = 11 : i64} {
  func.func @_pos_grid_kernel(%arg0: i32, %arg1: i32, %arg2: memref<1x2x256xf32, #tpu.memory_space<vmem>>, %arg3: memref<2x64x1xf32, #tpu.memory_space<vmem>>, %arg4: memref<1x64x256xf32, #tpu.memory_space<vmem>>) attributes {dimension_semantics = [#tpu.dimension_semantics<parallel>, #tpu.dimension_semantics<parallel>], iteration_bounds = array<i64: 1, 1>, scalar_prefetch = 0 : i64, scratch_operands = 0 : i64, tpu.core_type = #tpu.core_type<tc>, window_params = [{transform_indices = @transform_0, window_bounds = array<i64: 1, 2, 256>}, {pipeline_mode = #tpu.pipeline_mode<synchronous>, transform_indices = @transform_1, window_bounds = array<i64: 2, 64, 1>}, {transform_indices = @transform_2, window_bounds = array<i64: 1, 64, 256>}]} {
    %c0 = arith.constant 0 : index
    %c0_0 = arith.constant 0 : index
    %c0_1 = arith.constant 0 : index
    %0 = vector.load %arg2[%c0, %c0_0, %c0_1] : memref<1x2x256xf32, #tpu.memory_space<vmem>>, vector<1x1x256xf32>
    %1 = vector.shape_cast %0 : vector<1x1x256xf32> to vector<1x256xf32>
    %c0_2 = arith.constant 0 : index
    %c1 = arith.constant 1 : index
    %c0_3 = arith.constant 0 : index
    %2 = vector.load %arg2[%c0_2, %c1, %c0_3] : memref<1x2x256xf32, #tpu.memory_space<vmem>>, vector<1x1x256xf32>
    %3 = vector.shape_cast %2 : vector<1x1x256xf32> to vector<1x256xf32>
    %c0_4 = arith.constant 0 : index
    %c0_5 = arith.constant 0 : index
    %c0_6 = arith.constant 0 : index
    %4 = vector.load %arg3[%c0_4, %c0_5, %c0_6] : memref<2x64x1xf32, #tpu.memory_space<vmem>>, vector<1x64x1xf32>
    %5 = vector.shape_cast %4 : vector<1x64x1xf32> to vector<64x1xf32>
    %c1_7 = arith.constant 1 : index
    %c0_8 = arith.constant 0 : index
    %c0_9 = arith.constant 0 : index
    %6 = vector.load %arg3[%c1_7, %c0_8, %c0_9] : memref<2x64x1xf32, #tpu.memory_space<vmem>>, vector<1x64x1xf32>
    %7 = vector.shape_cast %6 : vector<1x64x1xf32> to vector<64x1xf32>
    %8 = vector.extract_strided_slice %5 {offsets = [0, 0], sizes = [32, 1], strides = [1, 1]} : vector<64x1xf32> to vector<32x1xf32>
    %9 = vector.broadcast %1 : vector<1x256xf32> to vector<32x256xf32>
    %10 = vector.broadcast %8 : vector<32x1xf32> to vector<32x256xf32>
    %11 = arith.mulf %9, %10 : vector<32x256xf32>
    %12 = vector.extract_strided_slice %7 {offsets = [0, 0], sizes = [32, 1], strides = [1, 1]} : vector<64x1xf32> to vector<32x1xf32>
    %13 = vector.broadcast %12 : vector<32x1xf32> to vector<32x256xf32>
    %14 = arith.addf %11, %13 : vector<32x256xf32>
    %15 = math.sin %14 : vector<32x256xf32>
    %c0_10 = arith.constant 0 : index
    %c0_11 = arith.constant 0 : index
    %c0_12 = arith.constant 0 : index
    %16 = vector.load %arg4[%c0_10, %c0_11, %c0_12] : memref<1x64x256xf32, #tpu.memory_space<vmem>>, vector<1x32x256xf32>
    %17 = vector.shape_cast %16 : vector<1x32x256xf32> to vector<32x256xf32>
    %18 = vector.shape_cast %15 : vector<32x256xf32> to vector<1x32x256xf32>
    tpu.vector_store %arg4[%c0_10, %c0_11, %c0_12], %18 {strides = array<i32>} : memref<1x64x256xf32, #tpu.memory_space<vmem>>, vector<1x32x256xf32>,
    %19 = vector.extract_strided_slice %5 {offsets = [32, 0], sizes = [32, 1], strides = [1, 1]} : vector<64x1xf32> to vector<32x1xf32>
    %20 = vector.broadcast %3 : vector<1x256xf32> to vector<32x256xf32>
    %21 = vector.broadcast %19 : vector<32x1xf32> to vector<32x256xf32>
    %22 = arith.mulf %20, %21 : vector<32x256xf32>
    %23 = vector.extract_strided_slice %7 {offsets = [32, 0], sizes = [32, 1], strides = [1, 1]} : vector<64x1xf32> to vector<32x1xf32>
    %24 = vector.broadcast %23 : vector<32x1xf32> to vector<32x256xf32>
    %25 = arith.addf %22, %24 : vector<32x256xf32>
    %26 = math.sin %25 : vector<32x256xf32>
    %c0_13 = arith.constant 0 : index
    %c32 = arith.constant 32 : index
    %c0_14 = arith.constant 0 : index
    %27 = vector.load %arg4[%c0_13, %c32, %c0_14] : memref<1x64x256xf32, #tpu.memory_space<vmem>>, vector<1x32x256xf32>
    %28 = vector.shape_cast %27 : vector<1x32x256xf32> to vector<32x256xf32>
    %29 = vector.shape_cast %26 : vector<32x256xf32> to vector<1x32x256xf32>
    tpu.vector_store %arg4[%c0_13, %c32, %c0_14], %29 {strides = array<i32>} : memref<1x64x256xf32, #tpu.memory_space<vmem>>, vector<1x32x256xf32>,
    return
  }
  func.func @transform_0(%arg0: i32, %arg1: i32) -> (i32, i32, i32) {
    %c0_i32 = arith.constant 0 : i32
    %c0_i32_0 = arith.constant 0 : i32
    return %arg0, %c0_i32, %arg1 : i32, i32, i32
  }
  func.func @transform_1(%arg0: i32, %arg1: i32) -> (i32, i32, i32) {
    %c0_i32 = arith.constant 0 : i32
    %c0_i32_0 = arith.constant 0 : i32
    %c0_i32_1 = arith.constant 0 : i32
    %c0_i32_2 = arith.constant 0 : i32
    return %c0_i32, %c0_i32_0, %c0_i32_1 : i32, i32, i32
  }
  func.func @transform_2(%arg0: i32, %arg1: i32) -> (i32, i32, i32) {
    %c0_i32 = arith.constant 0 : i32
    %c0_i32_0 = arith.constant 0 : i32
    return %arg0, %c0_i32, %arg1 : i32, i32, i32
  }
}

</mosaic_0001>

<llo_original>
// kernel: tpu_custom_call.1
$region0: #{tpu_custom_call.1}
  #allocation0 [shape = 'u32[]', space=smem, size = 0x4, offset = 0x4, fixed_abs, tag = 'smem constant byte address 0x4 - core index']
  #allocation1 [shape = 'u32[144,128]{1,0:T(1,128)}', space=vmem, size = 0x12000, scoped, tag = 'internal scratch']
  %s0 = inlined_call_operand.vmem [shape: f32[1,2,256], index: 0, kind: input, shape index: {}]
  %s1 = inlined_call_operand.vmem [shape: f32[2,64,1], index: 1, kind: input, shape index: {}]
  %s2 = inlined_call_operand.hbm [shape: f32[1,64,256], index: 2, kind: output, shape index: {}]
  %s3 = sld [smem:[#allocation0]]
  $region18: #{tpu_custom_call.1} parent=0
    _
  %s5 = ssub.s32 1, %s3
  %s6 = scalar_select 0, %s5, %s3
  $region1: #{tpu_custom_call.1} parent=0
    #allocation2 [shape = 'u8[65536]{0}', space=vmem, size = 0x10000, scoped, tag = 'output window, operand 0, single buffered']
    #allocation3 [shape = 's32[1]{0}', space=sflag, size = 0x4, scoped, tag = 'scoped memory for tpu_custom_call.1']
    %7 = vsyncpa [#allocation3], 0
    // Predicated region
    $region2: #{tpu_custom_call.1} parent=1 // pred_check
      _
    $region3: #{tpu_custom_call.1} parent=1 // pred_check_branch
      %9 = sbr.rel (0) target = $region5
    $region4: #{tpu_custom_call.1} parent=1 // pred_region
      _
    $region5: #{tpu_custom_call.1} parent=1 // pred_fallthru
      _
    // Predicated region
    $region6: #{tpu_custom_call.1} parent=1 // pred_check
      _
    $region7: #{tpu_custom_call.1} parent=1 // pred_check_branch
      %11 = sbr.rel (0) target = $region9
    $region8: #{tpu_custom_call.1} parent=1 // pred_region
      _
    $region9: #{tpu_custom_call.1} parent=1 // pred_fallthru
      _
    %v12 = vld [vmem:[%s0] ss:$2 sm:$0x3]
    %s13 = scalar_lea.vmem %s0, 1
    %v14 = vld [vmem:[%s13] ss:$2 sm:$0x3]
    %v15 = vld [vmem:[%s1] sm:$0xff]
    %v16 = vld [vmem:[%s1 + $0x8] sm:$0xff]
    %v17 = vld [vmem:[%s1 + $0x10] sm:$0xff]
    %v18 = vld [vmem:[%s1 + $0x18] sm:$0xff]
    %v19 = vld [vmem:[%s1 + $0x20] sm:$0xff]
    %v20 = vld [vmem:[%s1 + $0x28] sm:$0xff]
    %v21 = vld [vmem:[%s1 + $0x30] sm:$0xff]
    %v22 = vld [vmem:[%s1 + $0x38] sm:$0xff]
    %s23 = scalar_lea.vmem %s1, 64
    %v24 = vld [vmem:[%s23] sm:$0xff]
    %v25 = vld [vmem:[%s23 + $0x8] sm:$0xff]
    %v26 = vld [vmem:[%s23 + $0x10] sm:$0xff]
    %v27 = vld [vmem:[%s23 + $0x18] sm:$0xff]
    %v28 = vld [vmem:[%s23 + $0x20] sm:$0xff]
    %v29 = vld [vmem:[%s23 + $0x28] sm:$0xff]
    %v30 = vld [vmem:[%s23 + $0x30] sm:$0xff]
    %v31 = vld [vmem:[%s23 + $0x38] sm:$0xff]
    %v33 = vlaneseq
    %v34 = vshrl.u32 %v33, 7
    %v35 = vsub.s32 0, %v34
    %v36 = vrot.slane %v12, %v35
    %v37 = vlaneseq
    %v38 = vshrl.u32 %v37, 7
    %v39 = vsub.s32 1, %v38
    %v40 = vrot.slane %v12, %v39
    %44 = vset.pattern.permute.xlu0 0
    %45 = vperm.xlu0 %44, %v15
    %v46 = vpop.permute.xlu0 %45
    %49 = vset.pattern.permute.xlu0 0
    %50 = vperm.xlu0 %49, %v16
    %v51 = vpop.permute.xlu0 %50
    %54 = vset.pattern.permute.xlu0 0
    %55 = vperm.xlu0 %54, %v17
    %v56 = vpop.permute.xlu0 %55
    %59 = vset.pattern.permute.xlu0 0
    %60 = vperm.xlu0 %59, %v18
    %v61 = vpop.permute.xlu0 %60
    %v63 = vmul.f32 %v36, %v46
    %v64 = vmul.f32 %v40, %v46
    %v65 = vmul.f32 %v36, %v51
    %v66 = vmul.f32 %v40, %v51
    %v67 = vmul.f32 %v36, %v56
    %v68 = vmul.f32 %v40, %v56
    %v69 = vmul.f32 %v36, %v61
    %v70 = vmul.f32 %v40, %v61
    %72 = vset.pattern.permute.xlu0 0
    %73 = vperm.xlu0 %72, %v24
    %v74 = vpop.permute.xlu0 %73
    %77 = vset.pattern.permute.xlu0 0
    %78 = vperm.xlu0 %77, %v25
    %v79 = vpop.permute.xlu0 %78
    %82 = vset.pattern.permute.xlu0 0
    %83 = vperm.xlu0 %82, %v26
    %v84 = vpop.permute.xlu0 %83
    %87 = vset.pattern.permute.xlu0 0
    %88 = vperm.xlu0 %87, %v27
    %v89 = vpop.permute.xlu0 %88
    %v91 = vadd.f32 %v63, %v74
    %v92 = vadd.f32 %v64, %v74
    %v93 = vadd.f32 %v65, %v79
    %v94 = vadd.f32 %v66, %v79
    %v95 = vadd.f32 %v67, %v84
    %v96 = vadd.f32 %v68, %v84
    %v97 = vadd.f32 %v69, %v89
    %v98 = vadd.f32 %v70, %v89
    %v99 = vand.u32 2147483647, %v91
    %vm100 = vcmp.le.f32.partialorder %v99, 0.7853982
    %vm101 = vcmp.lt.s32.totalorder %v91, 0
    %v102 = vand.u32 %v91, 2139095040
    %v103 = vshrl.u32 %v102, 23
    %v104 = vsub.s32 %v103, 127
    %v105 = vand.u32 2147483647, %v91
    %v106 = vand.u32 %v105, 8388607
    %v107 = vor.u32 %v106, 8388608
    %v108 = vsub.s32 0, %v107
    %v109 = vadd.s32 %v104, 1
    %vm110 = vcmp.gt.s32.totalorder %v109, 0
    %v111 = vsel %vm110, %v109, 0
    %v112 = vshrl.u32 %v111, 5
    %v113 = vand.u32 %v111, 31
    %v114 = vsub.s32 32, %v113
    %v115 = vshrl.u32 683565275, %v114
    %v116 = vshll.u32 683565275, %v113
    %v117 = vshrl.u32 2475754826, %v114
    %v118 = vor.u32 %v116, %v117
    %v119 = vshll.u32 2475754826, %v113
    %v120 = vshrl.u32 2131351028, %v114
    %v121 = vor.u32 %v119, %v120
    %v122 = vshll.u32 2131351028, %v113
    %v123 = vshrl.u32 2102212464, %v114
    %v124 = vor.u32 %v122, %v123
    %v125 = vshll.u32 2102212464, %v113
    %v126 = vshrl.u32 920167782, %v114
    %v127 = vor.u32 %v125, %v126
    %v128 = vshll.u32 920167782, %v113
    %v129 = vshrl.u32 1326507024, %v114
    %v130 = vor.u32 %v128, %v129
    %vm131 = vcmp.lt.s32.totalorder %v112, 1
    %vm132 = vcmp.lt.s32.totalorder %v112, 2
    %vm133 = vcmp.lt.s32.totalorder %v112, 3
    %vm134 = vcmp.lt.s32.totalorder %v112, 4
    %v135 = vsel %vm131, %v115, %v118
    %v136 = vsel %vm134, %v124, 2102212464
    %v137 = vsel %vm133, %v121, %v136
    %v138 = vsel %vm132, %v135, %v137
    %v139 = vsel %vm131, %v118, %v121
    %v140 = vsel %vm134, %v127, 920167782
    %v141 = vsel %vm133, %v124, %v140
    %v142 = vsel %vm132, %v139, %v141
    %v143 = vsel %vm131, %v121, %v124
    %v144 = vsel %vm134, %v130, 1326507024
    %v145 = vsel %vm133, %v127, %v144
    %v146 = vsel %vm132, %v143, %v145
    %v147 = vshll.u32 %v107, 8
    %v148 = vmul.u32.u64.compose %v147, %v146
    %v149 = vextract.low.u32 %v148
    %v150 = vextract.high.u32 %v148
    %v151 = vmul.u32.u64.compose %v147, %v142
    %v152 = vextract.low.u32 %v151
    %v153 = vextract.high.u32 %v151
    %v154 = vmul.u32 %v147, %v138
    %v155 = vadd.s32 %v150, %v152
    %vm156 = vc.u32 %v150, %v152
    %v157 = vadd.s32 %v153, 1
    %v158 = vsel %vm156, %v157, %v153
    %v159 = vadd.s32 %v154, %v158
    %v160 = vadd.s32 %v159, 536870912
    %v161 = vshrl.u32 %v160, 30
    %v162 = vshll.u32 %v161, 30
    %v163 = vsub.s32 %v159, %v162
    %vm164 = vcmp.lt.s32.totalorder %v163, 0
    %v165 = vsub.s32 0, %v163
    %v166 = vsel %vm164, %v165, %v163
    %v167 = vclz %v166
    %v168 = vsub.s32 %v167, 2
    %vm169 = vcmp.gt.s32.totalorder 0, %v168
    %v170 = vsel %vm169, 0, %v168
    %v171 = vsub.s32 32, %v170
    %v172 = vshll.u32 %v163, %v170
    %v173 = vshrl.u32 %v155, %v171
    %v174 = vor.u32 %v172, %v173
    %v175 = vsub.s32 4294967266, %v170
    %v176 = vadd.s32 %v175, 127
    %v177 = vshll.u32 %v176, 23
    %v178 = vor.u32 4788187, %v177
    %v179 = vand.u32 2147483647, %v178
    %v181 = vcvt.s32.f32 %v174
    %v182 = vmul.f32 %v181, %v179
    %v183 = vxor.u32 %v182, 2147483648
    %v184 = vsel %vm101, %v183, %v182
    %v185 = vsub.s32 4, %v161
    %v186 = vsel %vm101, %v185, %v161
    %v187 = vsel %vm100, %v91, %v184
    %v188 = vsel %vm100, 0, %v186
    %v189 = vcosq.f32.pop %v187
    %v190 = vsinq.f32.pop %v187
    %vm191 = vweird.f32 %v91
    %v192 = vadd.s32 %v188, 3
    %v193 = vand.u32 %v192, 3
    %vm194 = vcmp.lt.s32.totalorder %v193, 2
    %vm195 = vcmp.eq.s32.totalorder %v193, 0
    %v196 = vxor.u32 %v190, 2147483648
    %v197 = vsel %vm195, %v189, %v196
    %vm198 = vcmp.eq.s32.totalorder %v193, 2
    %v199 = vxor.u32 %v189, 2147483648
    %v200 = vsel %vm198, %v199, %v190
    %v201 = vsel %vm194, %v197, %v200
    %v202 = vsel %vm191, nan, %v201
    %v203 = vand.u32 2147483647, %v92
    %vm204 = vcmp.le.f32.partialorder %v203, 0.7853982
    %vm205 = vcmp.lt.s32.totalorder %v92, 0
    %v206 = vand.u32 %v92, 2139095040
    %v207 = vshrl.u32 %v206, 23
    %v208 = vsub.s32 %v207, 127
    %v209 = vand.u32 2147483647, %v92
    %v210 = vand.u32 %v209, 8388607
    %v211 = vor.u32 %v210, 8388608
    %v212 = vsub.s32 0, %v211
    %v213 = vadd.s32 %v208, 1
    %vm214 = vcmp.gt.s32.totalorder %v213, 0
    %v215 = vsel %vm214, %v213, 0
    %v216 = vshrl.u32 %v215, 5
    %v217 = vand.u32 %v215, 31
    %v218 = vsub.s32 32, %v217
    %v219 = vshrl.u32 683565275, %v218
    %v220 = vshll.u32 683565275, %v217
    %v221 = vshrl.u32 2475754826, %v218
    %v222 = vor.u32 %v220, %v221
    %v223 = vshll.u32 2475754826, %v217
    %v224 = vshrl.u32 2131351028, %v218
    %v225 = vor.u32 %v223, %v224
    %v226 = vshll.u32 2131351028, %v217
    %v227 = vshrl.u32 2102212464, %v218
    %v228 = vor.u32 %v226, %v227
    %v229 = vshll.u32 2102212464, %v217
    %v230 = vshrl.u32 920167782, %v218
    %v231 = vor.u32 %v229, %v230
    %v232 = vshll.u32 920167782, %v217
    %v233 = vshrl.u32 1326507024, %v218
    %v234 = vor.u32 %v232, %v233
    %vm235 = vcmp.lt.s32.totalorder %v216, 1
    %vm236 = vcmp.lt.s32.totalorder %v216, 2
    %vm237 = vcmp.lt.s32.totalorder %v216, 3
    %vm238 = vcmp.lt.s32.totalorder %v216, 4
    %v239 = vsel %vm235, %v219, %v222
    %v240 = vsel %vm238, %v228, 2102212464
    %v241 = vsel %vm237, %v225, %v240
    %v242 = vsel %vm236, %v239, %v241
    %v243 = vsel %vm235, %v222, %v225
    %v244 = vsel %vm238, %v231, 920167782
    %v245 = vsel %vm237, %v228, %v244
    %v246 = vsel %vm236, %v243, %v245
    %v247 = vsel %vm235, %v225, %v228
    %v248 = vsel %vm238, %v234, 1326507024
    %v249 = vsel %vm237, %v231, %v248
    %v250 = vsel %vm236, %v247, %v249
    %v251 = vshll.u32 %v211, 8
    %v252 = vmul.u32.u64.compose %v251, %v250
    %v253 = vextract.low.u32 %v252
    %v254 = vextract.high.u32 %v252
    %v255 = vmul.u32.u64.compose %v251, %v246
    %v256 = vextract.low.u32 %v255
    %v257 = vextract.high.u32 %v255
    %v258 = vmul.u32 %v251, %v242
    %v259 = vadd.s32 %v254, %v256
    %vm260 = vc.u32 %v254, %v256
    %v261 = vadd.s32 %v257, 1
    %v262 = vsel %vm260, %v261, %v257
    %v263 = vadd.s32 %v258, %v262
    %v264 = vadd.s32 %v263, 536870912
    %v265 = vshrl.u32 %v264, 30
    %v266 = vshll.u32 %v265, 30
    %v267 = vsub.s32 %v263, %v266
    %vm268 = vcmp.lt.s32.totalorder %v267, 0
    %v269 = vsub.s32 0, %v267
    %v270 = vsel %vm268, %v269, %v267
    %v271 = vclz %v270
    %v272 = vsub.s32 %v271, 2
    %vm273 = vcmp.gt.s32.totalorder 0, %v272
    %v274 = vsel %vm273, 0, %v272
    %v275 = vsub.s32 32, %v274
    %v276 = vshll.u32 %v267, %v274
    %v277 = vshrl.u32 %v259, %v275
    %v278 = vor.u32 %v276, %v277
    %v279 = vsub.s32 4294967266, %v274
    %v280 = vadd.s32 %v279, 127
    %v281 = vshll.u32 %v280, 23
    %v282 = vor.u32 4788187, %v281
    %v283 = vand.u32 2147483647, %v282
    %v285 = vcvt.s32.f32 %v278
    %v286 = vmul.f32 %v285, %v283
    %v287 = vxor.u32 %v286, 2147483648
    %v288 = vsel %vm205, %v287, %v286
    %v289 = vsub.s32 4, %v265
    %v290 = vsel %vm205, %v289, %v265
    %v291 = vsel %vm204, %v92, %v288
    %v292 = vsel %vm204, 0, %v290
    %v293 = vcosq.f32.pop %v291
    %v294 = vsinq.f32.pop %v291
    %vm295 = vweird.f32 %v92
    %v296 = vadd.s32 %v292, 3
    %v297 = vand.u32 %v296, 3
    %vm298 = vcmp.lt.s32.totalorder %v297, 2
    %vm299 = vcmp.eq.s32.totalorder %v297, 0
    %v300 = vxor.u32 %v294, 2147483648
    %v301 = vsel %vm299, %v293, %v300
    %vm302 = vcmp.eq.s32.totalorder %v297, 2
    %v303 = vxor.u32 %v293, 2147483648
    %v304 = vsel %vm302, %v303, %v294
    %v305 = vsel %vm298, %v301, %v304
    %v306 = vsel %vm295, nan, %v305
    %v307 = vand.u32 2147483647, %v93
    %vm308 = vcmp.le.f32.partialorder %v307, 0.7853982
    %vm309 = vcmp.lt.s32.totalorder %v93, 0
    %v310 = vand.u32 %v93, 2139095040
    %v311 = vshrl.u32 %v310, 23
    %v312 = vsub.s32 %v311, 127
    %v313 = vand.u32 2147483647, %v93
    %v314 = vand.u32 %v313, 8388607
    %v315 = vor.u32 %v314, 8388608
    %v316 = vsub.s32 0, %v315
    %v317 = vadd.s32 %v312, 1
    %vm318 = vcmp.gt.s32.totalorder %v317, 0
    %v319 = vsel %vm318, %v317, 0
    %v320 = vshrl.u32 %v319, 5
    %v321 = vand.u32 %v319, 31
    %v322 = vsub.s32 32, %v321
    %v323 = vshrl.u32 683565275, %v322
    %v324 = vshll.u32 683565275, %v321
    %v325 = vshrl.u32 2475754826, %v322
    %v326 = vor.u32 %v324, %v325
    %v327 = vshll.u32 2475754826, %v321
    %v328 = vshrl.u32 2131351028, %v322
    %v329 = vor.u32 %v327, %v328
    %v330 = vshll.u32 2131351028, %v321
    %v331 = vshrl.u32 2102212464, %v322
    %v332 = vor.u32 %v330, %v331
    %v333 = vshll.u32 2102212464, %v321
    %v334 = vshrl.u32 920167782, %v322
    %v335 = vor.u32 %v333, %v334
    %v336 = vshll.u32 920167782, %v321
    %v337 = vshrl.u32 1326507024, %v322
    %v338 = vor.u32 %v336, %v337
    %vm339 = vcmp.lt.s32.totalorder %v320, 1
    %vm340 = vcmp.lt.s32.totalorder %v320, 2
    %vm341 = vcmp.lt.s32.totalorder %v320, 3
    %vm342 = vcmp.lt.s32.totalorder %v320, 4
    %v343 = vsel %vm339, %v323, %v326
    %v344 = vsel %vm342, %v332, 2102212464
    %v345 = vsel %vm341, %v329, %v344
    %v346 = vsel %vm340, %v343, %v345
    %v347 = vsel %vm339, %v326, %v329
    %v348 = vsel %vm342, %v335, 920167782
    %v349 = vsel %vm341, %v332, %v348
    %v350 = vsel %vm340, %v347, %v349
    %v351 = vsel %vm339, %v329, %v332
    %v352 = vsel %vm342, %v338, 1326507024
    %v353 = vsel %vm341, %v335, %v352
    %v354 = vsel %vm340, %v351, %v353
    %v355 = vshll.u32 %v315, 8
    %v356 = vmul.u32.u64.compose %v355, %v354
    %v357 = vextract.low.u32 %v356
    %v358 = vextract.high.u32 %v356
    %v359 = vmul.u32.u64.compose %v355, %v350
    %v360 = vextract.low.u32 %v359
    %v361 = vextract.high.u32 %v359
    %v362 = vmul.u32 %v355, %v346
    %v363 = vadd.s32 %v358, %v360
    %vm364 = vc.u32 %v358, %v360
    %v365 = vadd.s32 %v361, 1
    %v366 = vsel %vm364, %v365, %v361
    %v367 = vadd.s32 %v362, %v366
    %v368 = vadd.s32 %v367, 536870912
    %v369 = vshrl.u32 %v368, 30
    %v370 = vshll.u32 %v369, 30
    %v371 = vsub.s32 %v367, %v370
    %vm372 = vcmp.lt.s32.totalorder %v371, 0
    %v373 = vsub.s32 0, %v371
    %v374 = vsel %vm372, %v373, %v371
    %v375 = vclz %v374
    %v376 = vsub.s32 %v375, 2
    %vm377 = vcmp.gt.s32.totalorder 0, %v376
    %v378 = vsel %vm377, 0, %v376
    %v379 = vsub.s32 32, %v378
    %v380 = vshll.u32 %v371, %v378
    %v381 = vshrl.u32 %v363, %v379
    %v382 = vor.u32 %v380, %v381
    %v383 = vsub.s32 4294967266, %v378
    %v384 = vadd.s32 %v383, 127
    %v385 = vshll.u32 %v384, 23
    %v386 = vor.u32 4788187, %v385
    %v387 = vand.u32 2147483647, %v386
    %v389 = vcvt.s32.f32 %v382
    %v390 = vmul.f32 %v389, %v387
    %v391 = vxor.u32 %v390, 2147483648
    %v392 = vsel %vm309, %v391, %v390
    %v393 = vsub.s32 4, %v369
    %v394 = vsel %vm309, %v393, %v369
    %v395 = vsel %vm308, %v93, %v392
    %v396 = vsel %vm308, 0, %v394
    %v397 = vcosq.f32.pop %v395
    %v398 = vsinq.f32.pop %v395
    %vm399 = vweird.f32 %v93
    %v400 = vadd.s32 %v396, 3
    %v401 = vand.u32 %v400, 3
    %vm402 = vcmp.lt.s32.totalorder %v401, 2
    %vm403 = vcmp.eq.s32.totalorder %v401, 0
    %v404 = vxor.u32 %v398, 2147483648
    %v405 = vsel %vm403, %v397, %v404
    %vm406 = vcmp.eq.s32.totalorder %v401, 2
    %v407 = vxor.u32 %v397, 2147483648
    %v408 = vsel %vm406, %v407, %v398
    %v409 = vsel %vm402, %v405, %v408
    %v410 = vsel %vm399, nan, %v409
    %v411 = vand.u32 2147483647, %v94
    %vm412 = vcmp.le.f32.partialorder %v411, 0.7853982
    %vm413 = vcmp.lt.s32.totalorder %v94, 0
    %v414 = vand.u32 %v94, 2139095040
    %v415 = vshrl.u32 %v414, 23
    %v416 = vsub.s32 %v415, 127
    %v417 = vand.u32 2147483647, %v94
    %v418 = vand.u32 %v417, 8388607
    %v419 = vor.u32 %v418, 8388608
    %v420 = vsub.s32 0, %v419
    %v421 = vadd.s32 %v416, 1
    %vm422 = vcmp.gt.s32.totalorder %v421, 0
    %v423 = vsel %vm422, %v421, 0
    %v424 = vshrl.u32 %v423, 5
    %v425 = vand.u32 %v423, 31
    %v426 = vsub.s32 32, %v425
    %v427 = vshrl.u32 683565275, %v426
    %v428 = vshll.u32 683565275, %v425
    %v429 = vshrl.u32 2475754826, %v426
    %v430 = vor.u32 %v428, %v429
    %v431 = vshll.u32 2475754826, %v425
    %v432 = vshrl.u32 2131351028, %v426
    %v433 = vor.u32 %v431, %v432
    %v434 = vshll.u32 2131351028, %v425
    %v435 = vshrl.u32 2102212464, %v426
    %v436 = vor.u32 %v434, %v435
    %v437 = vshll.u32 2102212464, %v425
    %v438 = vshrl.u32 920167782, %v426
    %v439 = vor.u32 %v437, %v438
    %v440 = vshll.u32 920167782, %v425
    %v441 = vshrl.u32 1326507024, %v426
    %v442 = vor.u32 %v440, %v441
    %vm443 = vcmp.lt.s32.totalorder %v424, 1
    %vm444 = vcmp.lt.s32.totalorder %v424, 2
    %vm445 = vcmp.lt.s32.totalorder %v424, 3
    %vm446 = vcmp.lt.s32.totalorder %v424, 4
    %v447 = vsel %vm443, %v427, %v430
    %v448 = vsel %vm446, %v436, 2102212464
    %v449 = vsel %vm445, %v433, %v448
    %v450 = vsel %vm444, %v447, %v449
    %v451 = vsel %vm443, %v430, %v433
    %v452 = vsel %vm446, %v439, 920167782
    %v453 = vsel %vm445, %v436, %v452
    %v454 = vsel %vm444, %v451, %v453
    %v455 = vsel %vm443, %v433, %v436
    %v456 = vsel %vm446, %v442, 1326507024
    %v457 = vsel %vm445, %v439, %v456
    %v458 = vsel %vm444, %v455, %v457
    %v459 = vshll.u32 %v419, 8
    %v460 = vmul.u32.u64.compose %v459, %v458
    %v461 = vextract.low.u32 %v460
    %v462 = vextract.high.u32 %v460
    %v463 = vmul.u32.u64.compose %v459, %v454
    %v464 = vextract.low.u32 %v463
    %v465 = vextract.high.u32 %v463
    %v466 = vmul.u32 %v459, %v450
    %v467 = vadd.s32 %v462, %v464
    %vm468 = vc.u32 %v462, %v464
    %v469 = vadd.s32 %v465, 1
    %v470 = vsel %vm468, %v469, %v465
    %v471 = vadd.s32 %v466, %v470
    %v472 = vadd.s32 %v471, 536870912
    %v473 = vshrl.u32 %v472, 30
    %v474 = vshll.u32 %v473, 30
    %v475 = vsub.s32 %v471, %v474
    %vm476 = vcmp.lt.s32.totalorder %v475, 0
    %v477 = vsub.s32 0, %v475
    %v478 = vsel %vm476, %v477, %v475
    %v479 = vclz %v478
    %v480 = vsub.s32 %v479, 2
    %vm481 = vcmp.gt.s32.totalorder 0, %v480
    %v482 = vsel %vm481, 0, %v480
    %v483 = vsub.s32 32, %v482
    %v484 = vshll.u32 %v475, %v482
    %v485 = vshrl.u32 %v467, %v483
    %v486 = vor.u32 %v484, %v485
    %v487 = vsub.s32 4294967266, %v482
    %v488 = vadd.s32 %v487, 127
    %v489 = vshll.u32 %v488, 23
    %v490 = vor.u32 4788187, %v489
    %v491 = vand.u32 2147483647, %v490
    %v493 = vcvt.s32.f32 %v486
    %v494 = vmul.f32 %v493, %v491
    %v495 = vxor.u32 %v494, 2147483648
    %v496 = vsel %vm413, %v495, %v494
    %v497 = vsub.s32 4, %v473
    %v498 = vsel %vm413, %v497, %v473
    %v499 = vsel %vm412, %v94, %v496
    %v500 = vsel %vm412, 0, %v498
    %v501 = vcosq.f32.pop %v499
    %v502 = vsinq.f32.pop %v499
    %vm503 = vweird.f32 %v94
    %v504 = vadd.s32 %v500, 3
    %v505 = vand.u32 %v504, 3
    %vm506 = vcmp.lt.s32.totalorder %v505, 2
    %vm507 = vcmp.eq.s32.totalorder %v505, 0
    %v508 = vxor.u32 %v502, 2147483648
    %v509 = vsel %vm507, %v501, %v508
    %vm510 = vcmp.eq.s32.totalorder %v505, 2
    %v511 = vxor.u32 %v501, 2147483648
    %v512 = vsel %vm510, %v511, %v502
    %v513 = vsel %vm506, %v509, %v512
    %v514 = vsel %vm503, nan, %v513
    %v515 = vand.u32 2147483647, %v95
    %vm516 = vcmp.le.f32.partialorder %v515, 0.7853982
    %vm517 = vcmp.lt.s32.totalorder %v95, 0
    %v518 = vand.u32 %v95, 2139095040
    %v519 = vshrl.u32 %v518, 23
    %v520 = vsub.s32 %v519, 127
    %v521 = vand.u32 2147483647, %v95
    %v522 = vand.u32 %v521, 8388607
    %v523 = vor.u32 %v522, 8388608
    %v524 = vsub.s32 0, %v523
    %v525 = vadd.s32 %v520, 1
    %vm526 = vcmp.gt.s32.totalorder %v525, 0
    %v527 = vsel %vm526, %v525, 0
    %v528 = vshrl.u32 %v527, 5
    %v529 = vand.u32 %v527, 31
    %v530 = vsub.s32 32, %v529
    %v531 = vshrl.u32 683565275, %v530
    %v532 = vshll.u32 683565275, %v529
    %v533 = vshrl.u32 2475754826, %v530
    %v534 = vor.u32 %v532, %v533
    %v535 = vshll.u32 2475754826, %v529
    %v536 = vshrl.u32 2131351028, %v530
    %v537 = vor.u32 %v535, %v536
    %v538 = vshll.u32 2131351028, %v529
    %v539 = vshrl.u32 2102212464, %v530
    %v540 = vor.u32 %v538, %v539
    %v541 = vshll.u32 2102212464, %v529
    %v542 = vshrl.u32 920167782, %v530
    %v543 = vor.u32 %v541, %v542
    %v544 = vshll.u32 920167782, %v529
    %v545 = vshrl.u32 1326507024, %v530
    %v546 = vor.u32 %v544, %v545
    %vm547 = vcmp.lt.s32.totalorder %v528, 1
    %vm548 = vcmp.lt.s32.totalorder %v528, 2
    %vm549 = vcmp.lt.s32.totalorder %v528, 3
    %vm550 = vcmp.lt.s32.totalorder %v528, 4
    %v551 = vsel %vm547, %v531, %v534
    %v552 = vsel %vm550, %v540, 2102212464
    %v553 = vsel %vm549, %v537, %v552
    %v554 = vsel %vm548, %v551, %v553
    %v555 = vsel %vm547, %v534, %v537
    %v556 = vsel %vm550, %v543, 920167782
    %v557 = vsel %vm549, %v540, %v556
    %v558 = vsel %vm548, %v555, %v557
    %v559 = vsel %vm547, %v537, %v540
    %v560 = vsel %vm550, %v546, 1326507024
    %v561 = vsel %vm549, %v543, %v560
    %v562 = vsel %vm548, %v559, %v561
    %v563 = vshll.u32 %v523, 8
    %v564 = vmul.u32.u64.compose %v563, %v562
    %v565 = vextract.low.u32 %v564
    %v566 = vextract.high.u32 %v564
    %v567 = vmul.u32.u64.compose %v563, %v558
    %v568 = vextract.low.u32 %v567
    %v569 = vextract.high.u32 %v567
    %v570 = vmul.u32 %v563, %v554
    %v571 = vadd.s32 %v566, %v568
    %vm572 = vc.u32 %v566, %v568
    %v573 = vadd.s32 %v569, 1
    %v574 = vsel %vm572, %v573, %v569
    %v575 = vadd.s32 %v570, %v574
    %v576 = vadd.s32 %v575, 536870912
    %v577 = vshrl.u32 %v576, 30
    %v578 = vshll.u32 %v577, 30
    %v579 = vsub.s32 %v575, %v578
    %vm580 = vcmp.lt.s32.totalorder %v579, 0
    %v581 = vsub.s32 0, %v579
    %v582 = vsel %vm580, %v581, %v579
    %v583 = vclz %v582
    %v584 = vsub.s32 %v583, 2
    %vm585 = vcmp.gt.s32.totalorder 0, %v584
    %v586 = vsel %vm585, 0, %v584
    %v587 = vsub.s32 32, %v586
    %v588 = vshll.u32 %v579, %v586
    %v589 = vshrl.u32 %v571, %v587
    %v590 = vor.u32 %v588, %v589
    %v591 = vsub.s32 4294967266, %v586
    %v592 = vadd.s32 %v591, 127
    %v593 = vshll.u32 %v592, 23
    %v594 = vor.u32 4788187, %v593
    %v595 = vand.u32 2147483647, %v594
    %v597 = vcvt.s32.f32 %v590
    %v598 = vmul.f32 %v597, %v595
    %v599 = vxor.u32 %v598, 2147483648
    %v600 = vsel %vm517, %v599, %v598
    %v601 = vsub.s32 4, %v577
    %v602 = vsel %vm517, %v601, %v577
    %v603 = vsel %vm516, %v95, %v600
    %v604 = vsel %vm516, 0, %v602
    %v605 = vcosq.f32.pop %v603
    %v606 = vsinq.f32.pop %v603
    %vm607 = vweird.f32 %v95
    %v608 = vadd.s32 %v604, 3
    %v609 = vand.u32 %v608, 3
    %vm610 = vcmp.lt.s32.totalorder %v609, 2
    %vm611 = vcmp.eq.s32.totalorder %v609, 0
    %v612 = vxor.u32 %v606, 2147483648
    %v613 = vsel %vm611, %v605, %v612
    %vm614 = vcmp.eq.s32.totalorder %v609, 2
    %v615 = vxor.u32 %v605, 2147483648
    %v616 = vsel %vm614, %v615, %v606
    %v617 = vsel %vm610, %v613, %v616
    %v618 = vsel %vm607, nan, %v617
    %v619 = vand.u32 2147483647, %v96
    %vm620 = vcmp.le.f32.partialorder %v619, 0.7853982
    %vm621 = vcmp.lt.s32.totalorder %v96, 0
    %v622 = vand.u32 %v96, 2139095040
    %v623 = vshrl.u32 %v622, 23
    %v624 = vsub.s32 %v623, 127
    %v625 = vand.u32 2147483647, %v96
    %v626 = vand.u32 %v625, 8388607
    %v627 = vor.u32 %v626, 8388608
    %v628 = vsub.s32 0, %v627
    %v629 = vadd.s32 %v624, 1
    %vm630 = vcmp.gt.s32.totalorder %v629, 0
    %v631 = vsel %vm630, %v629, 0
    %v632 = vshrl.u32 %v631, 5
    %v633 = vand.u32 %v631, 31
    %v634 = vsub.s32 32, %v633
    %v635 = vshrl.u32 683565275, %v634
    %v636 = vshll.u32 683565275, %v633
    %v637 = vshrl.u32 2475754826, %v634
    %v638 = vor.u32 %v636, %v637
    %v639 = vshll.u32 2475754826, %v633
    %v640 = vshrl.u32 2131351028, %v634
    %v641 = vor.u32 %v639, %v640
    %v642 = vshll.u32 2131351028, %v633
    %v643 = vshrl.u32 2102212464, %v634
    %v644 = vor.u32 %v642, %v643
    %v645 = vshll.u32 2102212464, %v633
    %v646 = vshrl.u32 920167782, %v634
    %v647 = vor.u32 %v645, %v646
    %v648 = vshll.u32 920167782, %v633
    %v649 = vshrl.u32 1326507024, %v634
    %v650 = vor.u32 %v648, %v649
    %vm651 = vcmp.lt.s32.totalorder %v632, 1
    %vm652 = vcmp.lt.s32.totalorder %v632, 2
    %vm653 = vcmp.lt.s32.totalorder %v632, 3
    %vm654 = vcmp.lt.s32.totalorder %v632, 4
    %v655 = vsel %vm651, %v635, %v638
    %v656 = vsel %vm654, %v644, 2102212464
    %v657 = vsel %vm653, %v641, %v656
    %v658 = vsel %vm652, %v655, %v657
    %v659 = vsel %vm651, %v638, %v641
    %v660 = vsel %vm654, %v647, 920167782
    %v661 = vsel %vm653, %v644, %v660
    %v662 = vsel %vm652, %v659, %v661
    %v663 = vsel %vm651, %v641, %v644
    %v664 = vsel %vm654, %v650, 1326507024
    %v665 = vsel %vm653, %v647, %v664
    %v666 = vsel %vm652, %v663, %v665
    %v667 = vshll.u32 %v627, 8
    %v668 = vmul.u32.u64.compose %v667, %v666
    %v669 = vextract.low.u32 %v668
    %v670 = vextract.high.u32 %v668
    %v671 = vmul.u32.u64.compose %v667, %v662
    %v672 = vextract.low.u32 %v671
    %v673 = vextract.high.u32 %v671
    %v674 = vmul.u32 %v667, %v658
    %v675 = vadd.s32 %v670, %v672
    %vm676 = vc.u32 %v670, %v672
    %v677 = vadd.s32 %v673, 1
    %v678 = vsel %vm676, %v677, %v673
    %v679 = vadd.s32 %v674, %v678
    %v680 = vadd.s32 %v679, 536870912
    %v681 = vshrl.u32 %v680, 30
    %v682 = vshll.u32 %v681, 30
    %v683 = vsub.s32 %v679, %v682
    %vm684 = vcmp.lt.s32.totalorder %v683, 0
    %v685 = vsub.s32 0, %v683
    %v686 = vsel %vm684, %v685, %v683
    %v687 = vclz %v686
    %v688 = vsub.s32 %v687, 2
    %vm689 = vcmp.gt.s32.totalorder 0, %v688
    %v690 = vsel %vm689, 0, %v688
    %v691 = vsub.s32 32, %v690
    %v692 = vshll.u32 %v683, %v690
    %v693 = vshrl.u32 %v675, %v691
    %v694 = vor.u32 %v692, %v693
    %v695 = vsub.s32 4294967266, %v690
    %v696 = vadd.s32 %v695, 127
    %v697 = vshll.u32 %v696, 23
    %v698 = vor.u32 4788187, %v697
    %v699 = vand.u32 2147483647, %v698
    %v701 = vcvt.s32.f32 %v694
    %v702 = vmul.f32 %v701, %v699
    %v703 = vxor.u32 %v702, 2147483648
    %v704 = vsel %vm621, %v703, %v702
    %v705 = vsub.s32 4, %v681
    %v706 = vsel %vm621, %v705, %v681
    %v707 = vsel %vm620, %v96, %v704
    %v708 = vsel %vm620, 0, %v706
    %v709 = vcosq.f32.pop %v707
    %v710 = vsinq.f32.pop %v707
    %vm711 = vweird.f32 %v96
    %v712 = vadd.s32 %v708, 3
    %v713 = vand.u32 %v712, 3
    %vm714 = vcmp.lt.s32.totalorder %v713, 2
    %vm715 = vcmp.eq.s32.totalorder %v713, 0
    %v716 = vxor.u32 %v710, 2147483648
    %v717 = vsel %vm715, %v709, %v716
    %vm718 = vcmp.eq.s32.totalorder %v713, 2
    %v719 = vxor.u32 %v709, 2147483648
    %v720 = vsel %vm718, %v719, %v710
    %v721 = vsel %vm714, %v717, %v720
    %v722 = vsel %vm711, nan, %v721
    %v723 = vand.u32 2147483647, %v97
    %vm724 = vcmp.le.f32.partialorder %v723, 0.7853982
    %vm725 = vcmp.lt.s32.totalorder %v97, 0
    %v726 = vand.u32 %v97, 2139095040
    %v727 = vshrl.u32 %v726, 23
    %v728 = vsub.s32 %v727, 127
    %v729 = vand.u32 2147483647, %v97
    %v730 = vand.u32 %v729, 8388607
    %v731 = vor.u32 %v730, 8388608
    %v732 = vsub.s32 0, %v731
    %v733 = vadd.s32 %v728, 1
    %vm734 = vcmp.gt.s32.totalorder %v733, 0
    %v735 = vsel %vm734, %v733, 0
    %v736 = vshrl.u32 %v735, 5
    %v737 = vand.u32 %v735, 31
    %v738 = vsub.s32 32, %v737
    %v739 = vshrl.u32 683565275, %v738
    %v740 = vshll.u32 683565275, %v737
    %v741 = vshrl.u32 2475754826, %v738
    %v742 = vor.u32 %v740, %v741
    %v743 = vshll.u32 2475754826, %v737
    %v744 = vshrl.u32 2131351028, %v738
    %v745 = vor.u32 %v743, %v744
    %v746 = vshll.u32 2131351028, %v737
    %v747 = vshrl.u32 2102212464, %v738
    %v748 = vor.u32 %v746, %v747
    %v749 = vshll.u32 2102212464, %v737
    %v750 = vshrl.u32 920167782, %v738
    %v751 = vor.u32 %v749, %v750
    %v752 = vshll.u32 920167782, %v737
    %v753 = vshrl.u32 1326507024, %v738
    %v754 = vor.u32 %v752, %v753
    %vm755 = vcmp.lt.s32.totalorder %v736, 1
    %vm756 = vcmp.lt.s32.totalorder %v736, 2
    %vm757 = vcmp.lt.s32.totalorder %v736, 3
    %vm758 = vcmp.lt.s32.totalorder %v736, 4
    %v759 = vsel %vm755, %v739, %v742
    %v760 = vsel %vm758, %v748, 2102212464
    %v761 = vsel %vm757, %v745, %v760
    %v762 = vsel %vm756, %v759, %v761
    %v763 = vsel %vm755, %v742, %v745
    %v764 = vsel %vm758, %v751, 920167782
    %v765 = vsel %vm757, %v748, %v764
    %v766 = vsel %vm756, %v763, %v765
    %v767 = vsel %vm755, %v745, %v748
    %v768 = vsel %vm758, %v754, 1326507024
    %v769 = vsel %vm757, %v751, %v768
    %v770 = vsel %vm756, %v767, %v769
    %v771 = vshll.u32 %v731, 8
    %v772 = vmul.u32.u64.compose %v771, %v770
    %v773 = vextract.low.u32 %v772
    %v774 = vextract.high.u32 %v772
    %v775 = vmul.u32.u64.compose %v771, %v766
    %v776 = vextract.low.u32 %v775
    %v777 = vextract.high.u32 %v775
    %v778 = vmul.u32 %v771, %v762
    %v779 = vadd.s32 %v774, %v776
    %vm780 = vc.u32 %v774, %v776
    %v781 = vadd.s32 %v777, 1
    %v782 = vsel %vm780, %v781, %v777
    %v783 = vadd.s32 %v778, %v782
    %v784 = vadd.s32 %v783, 536870912
    %v785 = vshrl.u32 %v784, 30
    %v786 = vshll.u32 %v785, 30
    %v787 = vsub.s32 %v783, %v786
    %vm788 = vcmp.lt.s32.totalorder %v787, 0
    %v789 = vsub.s32 0, %v787
    %v790 = vsel %vm788, %v789, %v787
    %v791 = vclz %v790
    %v792 = vsub.s32 %v791, 2
    %vm793 = vcmp.gt.s32.totalorder 0, %v792
    %v794 = vsel %vm793, 0, %v792
    %v795 = vsub.s32 32, %v794
    %v796 = vshll.u32 %v787, %v794
    %v797 = vshrl.u32 %v779, %v795
    %v798 = vor.u32 %v796, %v797
    %v799 = vsub.s32 4294967266, %v794
    %v800 = vadd.s32 %v799, 127
    %v801 = vshll.u32 %v800, 23
    %v802 = vor.u32 4788187, %v801
    %v803 = vand.u32 2147483647, %v802
    %v805 = vcvt.s32.f32 %v798
    %v806 = vmul.f32 %v805, %v803
    %v807 = vxor.u32 %v806, 2147483648
    %v808 = vsel %vm725, %v807, %v806
    %v809 = vsub.s32 4, %v785
    %v810 = vsel %vm725, %v809, %v785
    %v811 = vsel %vm724, %v97, %v808
    %v812 = vsel %vm724, 0, %v810
    %v813 = vcosq.f32.pop %v811
    %v814 = vsinq.f32.pop %v811
    %vm815 = vweird.f32 %v97
    %v816 = vadd.s32 %v812, 3
    %v817 = vand.u32 %v816, 3
    %vm818 = vcmp.lt.s32.totalorder %v817, 2
    %vm819 = vcmp.eq.s32.totalorder %v817, 0
    %v820 = vxor.u32 %v814, 2147483648
    %v821 = vsel %vm819, %v813, %v820
    %vm822 = vcmp.eq.s32.totalorder %v817, 2
    %v823 = vxor.u32 %v813, 2147483648
    %v824 = vsel %vm822, %v823, %v814
    %v825 = vsel %vm818, %v821, %v824
    %v826 = vsel %vm815, nan, %v825
    %v827 = vand.u32 2147483647, %v98
    %vm828 = vcmp.le.f32.partialorder %v827, 0.7853982
    %vm829 = vcmp.lt.s32.totalorder %v98, 0
    %v830 = vand.u32 %v98, 2139095040
    %v831 = vshrl.u32 %v830, 23
    %v832 = vsub.s32 %v831, 127
    %v833 = vand.u32 2147483647, %v98
    %v834 = vand.u32 %v833, 8388607
    %v835 = vor.u32 %v834, 8388608
    %v836 = vsub.s32 0, %v835
    %v837 = vadd.s32 %v832, 1
    %vm838 = vcmp.gt.s32.totalorder %v837, 0
    %v839 = vsel %vm838, %v837, 0
    %v840 = vshrl.u32 %v839, 5
    %v841 = vand.u32 %v839, 31
    %v842 = vsub.s32 32, %v841
    %v843 = vshrl.u32 683565275, %v842
    %v844 = vshll.u32 683565275, %v841
    %v845 = vshrl.u32 2475754826, %v842
    %v846 = vor.u32 %v844, %v845
    %v847 = vshll.u32 2475754826, %v841
    %v848 = vshrl.u32 2131351028, %v842
    %v849 = vor.u32 %v847, %v848
    %v850 = vshll.u32 2131351028, %v841
    %v851 = vshrl.u32 2102212464, %v842
    %v852 = vor.u32 %v850, %v851
    %v853 = vshll.u32 2102212464, %v841
    %v854 = vshrl.u32 920167782, %v842
    %v855 = vor.u32 %v853, %v854
    %v856 = vshll.u32 920167782, %v841
    %v857 = vshrl.u32 1326507024, %v842
    %v858 = vor.u32 %v856, %v857
    %vm859 = vcmp.lt.s32.totalorder %v840, 1
    %vm860 = vcmp.lt.s32.totalorder %v840, 2
    %vm861 = vcmp.lt.s32.totalorder %v840, 3
    %vm862 = vcmp.lt.s32.totalorder %v840, 4
    %v863 = vsel %vm859, %v843, %v846
    %v864 = vsel %vm862, %v852, 2102212464
    %v865 = vsel %vm861, %v849, %v864
    %v866 = vsel %vm860, %v863, %v865
    %v867 = vsel %vm859, %v846, %v849
    %v868 = vsel %vm862, %v855, 920167782
    %v869 = vsel %vm861, %v852, %v868
    %v870 = vsel %vm860, %v867, %v869
    %v871 = vsel %vm859, %v849, %v852
    %v872 = vsel %vm862, %v858, 1326507024
    %v873 = vsel %vm861, %v855, %v872
    %v874 = vsel %vm860, %v871, %v873
    %v875 = vshll.u32 %v835, 8
    %v876 = vmul.u32.u64.compose %v875, %v874
    %v877 = vextract.low.u32 %v876
    %v878 = vextract.high.u32 %v876
    %v879 = vmul.u32.u64.compose %v875, %v870
    %v880 = vextract.low.u32 %v879
    %v881 = vextract.high.u32 %v879
    %v882 = vmul.u32 %v875, %v866
    %v883 = vadd.s32 %v878, %v880
    %vm884 = vc.u32 %v878, %v880
    %v885 = vadd.s32 %v881, 1
    %v886 = vsel %vm884, %v885, %v881
    %v887 = vadd.s32 %v882, %v886
    %v888 = vadd.s32 %v887, 536870912
    %v889 = vshrl.u32 %v888, 30
    %v890 = vshll.u32 %v889, 30
    %v891 = vsub.s32 %v887, %v890
    %vm892 = vcmp.lt.s32.totalorder %v891, 0
    %v893 = vsub.s32 0, %v891
    %v894 = vsel %vm892, %v893, %v891
    %v895 = vclz %v894
    %v896 = vsub.s32 %v895, 2
    %vm897 = vcmp.gt.s32.totalorder 0, %v896
    %v898 = vsel %vm897, 0, %v896
    %v899 = vsub.s32 32, %v898
    %v900 = vshll.u32 %v891, %v898
    %v901 = vshrl.u32 %v883, %v899
    %v902 = vor.u32 %v900, %v901
    %v903 = vsub.s32 4294967266, %v898
    %v904 = vadd.s32 %v903, 127
    %v905 = vshll.u32 %v904, 23
    %v906 = vor.u32 4788187, %v905
    %v907 = vand.u32 2147483647, %v906
    %v909 = vcvt.s32.f32 %v902
    %v910 = vmul.f32 %v909, %v907
    %v911 = vxor.u32 %v910, 2147483648
    %v912 = vsel %vm829, %v911, %v910
    %v913 = vsub.s32 4, %v889
    %v914 = vsel %vm829, %v913, %v889
    %v915 = vsel %vm828, %v98, %v912
    %v916 = vsel %vm828, 0, %v914
    %v917 = vcosq.f32.pop %v915
    %v918 = vsinq.f32.pop %v915
    %vm919 = vweird.f32 %v98
    %v920 = vadd.s32 %v916, 3
    %v921 = vand.u32 %v920, 3
    %vm922 = vcmp.lt.s32.totalorder %v921, 2
    %vm923 = vcmp.eq.s32.totalorder %v921, 0
    %v924 = vxor.u32 %v918, 2147483648
    %v925 = vsel %vm923, %v917, %v924
    %vm926 = vcmp.eq.s32.totalorder %v921, 2
    %v927 = vxor.u32 %v917, 2147483648
    %v928 = vsel %vm926, %v927, %v918
    %v929 = vsel %vm922, %v925, %v928
    %v930 = vsel %vm919, nan, %v929
    %931 = vst [vmem:[#allocation2] sm:$0xff] %v202
    %932 = vst [vmem:[#allocation2 + $0x8] sm:$0xff] %v306
    %933 = vst [vmem:[#allocation2 + $0x10] sm:$0xff] %v410
    %934 = vst [vmem:[#allocation2 + $0x18] sm:$0xff] %v514
    %935 = vst [vmem:[#allocation2 + $0x20] sm:$0xff] %v618
    %936 = vst [vmem:[#allocation2 + $0x28] sm:$0xff] %v722
    %937 = vst [vmem:[#allocation2 + $0x30] sm:$0xff] %v826
    %938 = vst [vmem:[#allocation2 + $0x38] sm:$0xff] %v930
    %v940 = vlaneseq
    %v941 = vshrl.u32 %v940, 7
    %v942 = vsub.s32 0, %v941
    %v943 = vrot.slane %v14, %v942
    %v944 = vlaneseq
    %v945 = vshrl.u32 %v944, 7
    %v946 = vsub.s32 1, %v945
    %v947 = vrot.slane %v14, %v946
    %951 = vset.pattern.permute.xlu0 0
    %952 = vperm.xlu0 %951, %v19
    %v953 = vpop.permute.xlu0 %952
    %956 = vset.pattern.permute.xlu0 0
    %957 = vperm.xlu0 %956, %v20
    %v958 = vpop.permute.xlu0 %957
    %961 = vset.pattern.permute.xlu0 0
    %962 = vperm.xlu0 %961, %v21
    %v963 = vpop.permute.xlu0 %962
    %966 = vset.pattern.permute.xlu0 0
    %967 = vperm.xlu0 %966, %v22
    %v968 = vpop.permute.xlu0 %967
    %v970 = vmul.f32 %v943, %v953
    %v971 = vmul.f32 %v947, %v953
    %v972 = vmul.f32 %v943, %v958
    %v973 = vmul.f32 %v947, %v958
    %v974 = vmul.f32 %v943, %v963
    %v975 = vmul.f32 %v947, %v963
    %v976 = vmul.f32 %v943, %v968
    %v977 = vmul.f32 %v947, %v968
    %979 = vset.pattern.permute.xlu0 0
    %980 = vperm.xlu0 %979, %v28
    %v981 = vpop.permute.xlu0 %980
    %984 = vset.pattern.permute.xlu0 0
    %985 = vperm.xlu0 %984, %v29
    %v986 = vpop.permute.xlu0 %985
    %989 = vset.pattern.permute.xlu0 0
    %990 = vperm.xlu0 %989, %v30
    %v991 = vpop.permute.xlu0 %990
    %994 = vset.pattern.permute.xlu0 0
    %995 = vperm.xlu0 %994, %v31
    %v996 = vpop.permute.xlu0 %995
    %v998 = vadd.f32 %v970, %v981
    %v999 = vadd.f32 %v971, %v981
    %v1000 = vadd.f32 %v972, %v986
    %v1001 = vadd.f32 %v973, %v986
    %v1002 = vadd.f32 %v974, %v991
    %v1003 = vadd.f32 %v975, %v991
    %v1004 = vadd.f32 %v976, %v996
    %v1005 = vadd.f32 %v977, %v996
    %v1006 = vand.u32 2147483647, %v998
    %vm1007 = vcmp.le.f32.partialorder %v1006, 0.7853982
    %vm1008 = vcmp.lt.s32.totalorder %v998, 0
    %v1009 = vand.u32 %v998, 2139095040
    %v1010 = vshrl.u32 %v1009, 23
    %v1011 = vsub.s32 %v1010, 127
    %v1012 = vand.u32 2147483647, %v998
    %v1013 = vand.u32 %v1012, 8388607
    %v1014 = vor.u32 %v1013, 8388608
    %v1015 = vsub.s32 0, %v1014
    %v1016 = vadd.s32 %v1011, 1
    %vm1017 = vcmp.gt.s32.totalorder %v1016, 0
    %v1018 = vsel %vm1017, %v1016, 0
    %v1019 = vshrl.u32 %v1018, 5
    %v1020 = vand.u32 %v1018, 31
    %v1021 = vsub.s32 32, %v1020
    %v1022 = vshrl.u32 683565275, %v1021
    %v1023 = vshll.u32 683565275, %v1020
    %v1024 = vshrl.u32 2475754826, %v1021
    %v1025 = vor.u32 %v1023, %v1024
    %v1026 = vshll.u32 2475754826, %v1020
    %v1027 = vshrl.u32 2131351028, %v1021
    %v1028 = vor.u32 %v1026, %v1027
    %v1029 = vshll.u32 2131351028, %v1020
    %v1030 = vshrl.u32 2102212464, %v1021
    %v1031 = vor.u32 %v1029, %v1030
    %v1032 = vshll.u32 2102212464, %v1020
    %v1033 = vshrl.u32 920167782, %v1021
    %v1034 = vor.u32 %v1032, %v1033
    %v1035 = vshll.u32 920167782, %v1020
    %v1036 = vshrl.u32 1326507024, %v1021
    %v1037 = vor.u32 %v1035, %v1036
    %vm1038 = vcmp.lt.s32.totalorder %v1019, 1
    %vm1039 = vcmp.lt.s32.totalorder %v1019, 2
    %vm1040 = vcmp.lt.s32.totalorder %v1019, 3
    %vm1041 = vcmp.lt.s32.totalorder %v1019, 4
    %v1042 = vsel %vm1038, %v1022, %v1025
    %v1043 = vsel %vm1041, %v1031, 2102212464
    %v1044 = vsel %vm1040, %v1028, %v1043
    %v1045 = vsel %vm1039, %v1042, %v1044
    %v1046 = vsel %vm1038, %v1025, %v1028
    %v1047 = vsel %vm1041, %v1034, 920167782
    %v1048 = vsel %vm1040, %v1031, %v1047
    %v1049 = vsel %vm1039, %v1046, %v1048
    %v1050 = vsel %vm1038, %v1028, %v1031
    %v1051 = vsel %vm1041, %v1037, 1326507024
    %v1052 = vsel %vm1040, %v1034, %v1051
    %v1053 = vsel %vm1039, %v1050, %v1052
    %v1054 = vshll.u32 %v1014, 8
    %v1055 = vmul.u32.u64.compose %v1054, %v1053
    %v1056 = vextract.low.u32 %v1055
    %v1057 = vextract.high.u32 %v1055
    %v1058 = vmul.u32.u64.compose %v1054, %v1049
    %v1059 = vextract.low.u32 %v1058
    %v1060 = vextract.high.u32 %v1058
    %v1061 = vmul.u32 %v1054, %v1045
    %v1062 = vadd.s32 %v1057, %v1059
    %vm1063 = vc.u32 %v1057, %v1059
    %v1064 = vadd.s32 %v1060, 1
    %v1065 = vsel %vm1063, %v1064, %v1060
    %v1066 = vadd.s32 %v1061, %v1065
    %v1067 = vadd.s32 %v1066, 536870912
    %v1068 = vshrl.u32 %v1067, 30
    %v1069 = vshll.u32 %v1068, 30
    %v1070 = vsub.s32 %v1066, %v1069
    %vm1071 = vcmp.lt.s32.totalorder %v1070, 0
    %v1072 = vsub.s32 0, %v1070
    %v1073 = vsel %vm1071, %v1072, %v1070
    %v1074 = vclz %v1073
    %v1075 = vsub.s32 %v1074, 2
    %vm1076 = vcmp.gt.s32.totalorder 0, %v1075
    %v1077 = vsel %vm1076, 0, %v1075
    %v1078 = vsub.s32 32, %v1077
    %v1079 = vshll.u32 %v1070, %v1077
    %v1080 = vshrl.u32 %v1062, %v1078
    %v1081 = vor.u32 %v1079, %v1080
    %v1082 = vsub.s32 4294967266, %v1077
    %v1083 = vadd.s32 %v1082, 127
    %v1084 = vshll.u32 %v1083, 23
    %v1085 = vor.u32 4788187, %v1084
    %v1086 = vand.u32 2147483647, %v1085
    %v1088 = vcvt.s32.f32 %v1081
    %v1089 = vmul.f32 %v1088, %v1086
    %v1090 = vxor.u32 %v1089, 2147483648
    %v1091 = vsel %vm1008, %v1090, %v1089
    %v1092 = vsub.s32 4, %v1068
    %v1093 = vsel %vm1008, %v1092, %v1068
    %v1094 = vsel %vm1007, %v998, %v1091
    %v1095 = vsel %vm1007, 0, %v1093
    %v1096 = vcosq.f32.pop %v1094
    %v1097 = vsinq.f32.pop %v1094
    %vm1098 = vweird.f32 %v998
    %v1099 = vadd.s32 %v1095, 3
    %v1100 = vand.u32 %v1099, 3
    %vm1101 = vcmp.lt.s32.totalorder %v1100, 2
    %vm1102 = vcmp.eq.s32.totalorder %v1100, 0
    %v1103 = vxor.u32 %v1097, 2147483648
    %v1104 = vsel %vm1102, %v1096, %v1103
    %vm1105 = vcmp.eq.s32.totalorder %v1100, 2
    %v1106 = vxor.u32 %v1096, 2147483648
    %v1107 = vsel %vm1105, %v1106, %v1097
    %v1108 = vsel %vm1101, %v1104, %v1107
    %v1109 = vsel %vm1098, nan, %v1108
    %v1110 = vand.u32 2147483647, %v999
    %vm1111 = vcmp.le.f32.partialorder %v1110, 0.7853982
    %vm1112 = vcmp.lt.s32.totalorder %v999, 0
    %v1113 = vand.u32 %v999, 2139095040
    %v1114 = vshrl.u32 %v1113, 23
    %v1115 = vsub.s32 %v1114, 127
    %v1116 = vand.u32 2147483647, %v999
    %v1117 = vand.u32 %v1116, 8388607
    %v1118 = vor.u32 %v1117, 8388608
    %v1119 = vsub.s32 0, %v1118
    %v1120 = vadd.s32 %v1115, 1
    %vm1121 = vcmp.gt.s32.totalorder %v1120, 0
    %v1122 = vsel %vm1121, %v1120, 0
    %v1123 = vshrl.u32 %v1122, 5
    %v1124 = vand.u32 %v1122, 31
    %v1125 = vsub.s32 32, %v1124
    %v1126 = vshrl.u32 683565275, %v1125
    %v1127 = vshll.u32 683565275, %v1124
    %v1128 = vshrl.u32 2475754826, %v1125
    %v1129 = vor.u32 %v1127, %v1128
    %v1130 = vshll.u32 2475754826, %v1124
    %v1131 = vshrl.u32 2131351028, %v1125
    %v1132 = vor.u32 %v1130, %v1131
    %v1133 = vshll.u32 2131351028, %v1124
    %v1134 = vshrl.u32 2102212464, %v1125
    %v1135 = vor.u32 %v1133, %v1134
    %v1136 = vshll.u32 2102212464, %v1124
    %v1137 = vshrl.u32 920167782, %v1125
    %v1138 = vor.u32 %v1136, %v1137
    %v1139 = vshll.u32 920167782, %v1124
    %v1140 = vshrl.u32 1326507024, %v1125
    %v1141 = vor.u32 %v1139, %v1140
    %vm1142 = vcmp.lt.s32.totalorder %v1123, 1
    %vm1143 = vcmp.lt.s32.totalorder %v1123, 2
    %vm1144 = vcmp.lt.s32.totalorder %v1123, 3
    %vm1145 = vcmp.lt.s32.totalorder %v1123, 4
    %v1146 = vsel %vm1142, %v1126, %v1129
    %v1147 = vsel %vm1145, %v1135, 2102212464
    %v1148 = vsel %vm1144, %v1132, %v1147
    %v1149 = vsel %vm1143, %v1146, %v1148
    %v1150 = vsel %vm1142, %v1129, %v1132
    %v1151 = vsel %vm1145, %v1138, 920167782
    %v1152 = vsel %vm1144, %v1135, %v1151
    %v1153 = vsel %vm1143, %v1150, %v1152
    %v1154 = vsel %vm1142, %v1132, %v1135
    %v1155 = vsel %vm1145, %v1141, 1326507024
    %v1156 = vsel %vm1144, %v1138, %v1155
    %v1157 = vsel %vm1143, %v1154, %v1156
    %v1158 = vshll.u32 %v1118, 8
    %v1159 = vmul.u32.u64.compose %v1158, %v1157
    %v1160 = vextract.low.u32 %v1159
    %v1161 = vextract.high.u32 %v1159
    %v1162 = vmul.u32.u64.compose %v1158, %v1153
    %v1163 = vextract.low.u32 %v1162
    %v1164 = vextract.high.u32 %v1162
    %v1165 = vmul.u32 %v1158, %v1149
    %v1166 = vadd.s32 %v1161, %v1163
    %vm1167 = vc.u32 %v1161, %v1163
    %v1168 = vadd.s32 %v1164, 1
    %v1169 = vsel %vm1167, %v1168, %v1164
    %v1170 = vadd.s32 %v1165, %v1169
    %v1171 = vadd.s32 %v1170, 536870912
    %v1172 = vshrl.u32 %v1171, 30
    %v1173 = vshll.u32 %v1172, 30
    %v1174 = vsub.s32 %v1170, %v1173
    %vm1175 = vcmp.lt.s32.totalorder %v1174, 0
    %v1176 = vsub.s32 0, %v1174
    %v1177 = vsel %vm1175, %v1176, %v1174
    %v1178 = vclz %v1177
    %v1179 = vsub.s32 %v1178, 2
    %vm1180 = vcmp.gt.s32.totalorder 0, %v1179
    %v1181 = vsel %vm1180, 0, %v1179
    %v1182 = vsub.s32 32, %v1181
    %v1183 = vshll.u32 %v1174, %v1181
    %v1184 = vshrl.u32 %v1166, %v1182
    %v1185 = vor.u32 %v1183, %v1184
    %v1186 = vsub.s32 4294967266, %v1181
    %v1187 = vadd.s32 %v1186, 127
    %v1188 = vshll.u32 %v1187, 23
    %v1189 = vor.u32 4788187, %v1188
    %v1190 = vand.u32 2147483647, %v1189
    %v1192 = vcvt.s32.f32 %v1185
    %v1193 = vmul.f32 %v1192, %v1190
    %v1194 = vxor.u32 %v1193, 2147483648
    %v1195 = vsel %vm1112, %v1194, %v1193
    %v1196 = vsub.s32 4, %v1172
    %v1197 = vsel %vm1112, %v1196, %v1172
    %v1198 = vsel %vm1111, %v999, %v1195
    %v1199 = vsel %vm1111, 0, %v1197
    %v1200 = vcosq.f32.pop %v1198
    %v1201 = vsinq.f32.pop %v1198
    %vm1202 = vweird.f32 %v999
    %v1203 = vadd.s32 %v1199, 3
    %v1204 = vand.u32 %v1203, 3
    %vm1205 = vcmp.lt.s32.totalorder %v1204, 2
    %vm1206 = vcmp.eq.s32.totalorder %v1204, 0
    %v1207 = vxor.u32 %v1201, 2147483648
    %v1208 = vsel %vm1206, %v1200, %v1207
    %vm1209 = vcmp.eq.s32.totalorder %v1204, 2
    %v1210 = vxor.u32 %v1200, 2147483648
    %v1211 = vsel %vm1209, %v1210, %v1201
    %v1212 = vsel %vm1205, %v1208, %v1211
    %v1213 = vsel %vm1202, nan, %v1212
    %v1214 = vand.u32 2147483647, %v1000
    %vm1215 = vcmp.le.f32.partialorder %v1214, 0.7853982
    %vm1216 = vcmp.lt.s32.totalorder %v1000, 0
    %v1217 = vand.u32 %v1000, 2139095040
    %v1218 = vshrl.u32 %v1217, 23
    %v1219 = vsub.s32 %v1218, 127
    %v1220 = vand.u32 2147483647, %v1000
    %v1221 = vand.u32 %v1220, 8388607
    %v1222 = vor.u32 %v1221, 8388608
    %v1223 = vsub.s32 0, %v1222
    %v1224 = vadd.s32 %v1219, 1
    %vm1225 = vcmp.gt.s32.totalorder %v1224, 0
    %v1226 = vsel %vm1225, %v1224, 0
    %v1227 = vshrl.u32 %v1226, 5
    %v1228 = vand.u32 %v1226, 31
    %v1229 = vsub.s32 32, %v1228
    %v1230 = vshrl.u32 683565275, %v1229
    %v1231 = vshll.u32 683565275, %v1228
    %v1232 = vshrl.u32 2475754826, %v1229
    %v1233 = vor.u32 %v1231, %v1232
    %v1234 = vshll.u32 2475754826, %v1228
    %v1235 = vshrl.u32 2131351028, %v1229
    %v1236 = vor.u32 %v1234, %v1235
    %v1237 = vshll.u32 2131351028, %v1228
    %v1238 = vshrl.u32 2102212464, %v1229
    %v1239 = vor.u32 %v1237, %v1238
    %v1240 = vshll.u32 2102212464, %v1228
    %v1241 = vshrl.u32 920167782, %v1229
    %v1242 = vor.u32 %v1240, %v1241
    %v1243 = vshll.u32 920167782, %v1228
    %v1244 = vshrl.u32 1326507024, %v1229
    %v1245 = vor.u32 %v1243, %v1244
    %vm1246 = vcmp.lt.s32.totalorder %v1227, 1
    %vm1247 = vcmp.lt.s32.totalorder %v1227, 2
    %vm1248 = vcmp.lt.s32.totalorder %v1227, 3
    %vm1249 = vcmp.lt.s32.totalorder %v1227, 4
    %v1250 = vsel %vm1246, %v1230, %v1233
    %v1251 = vsel %vm1249, %v1239, 2102212464
    %v1252 = vsel %vm1248, %v1236, %v1251
    %v1253 = vsel %vm1247, %v1250, %v1252
    %v1254 = vsel %vm1246, %v1233, %v1236
    %v1255 = vsel %vm1249, %v1242, 920167782
    %v1256 = vsel %vm1248, %v1239, %v1255
    %v1257 = vsel %vm1247, %v1254, %v1256
    %v1258 = vsel %vm1246, %v1236, %v1239
    %v1259 = vsel %vm1249, %v1245, 1326507024
    %v1260 = vsel %vm1248, %v1242, %v1259
    %v1261 = vsel %vm1247, %v1258, %v1260
    %v1262 = vshll.u32 %v1222, 8
    %v1263 = vmul.u32.u64.compose %v1262, %v1261
    %v1264 = vextract.low.u32 %v1263
    %v1265 = vextract.high.u32 %v1263
    %v1266 = vmul.u32.u64.compose %v1262, %v1257
    %v1267 = vextract.low.u32 %v1266
    %v1268 = vextract.high.u32 %v1266
    %v1269 = vmul.u32 %v1262, %v1253
    %v1270 = vadd.s32 %v1265, %v1267
    %vm1271 = vc.u32 %v1265, %v1267
    %v1272 = vadd.s32 %v1268, 1
    %v1273 = vsel %vm1271, %v1272, %v1268
    %v1274 = vadd.s32 %v1269, %v1273
    %v1275 = vadd.s32 %v1274, 536870912
    %v1276 = vshrl.u32 %v1275, 30
    %v1277 = vshll.u32 %v1276, 30
    %v1278 = vsub.s32 %v1274, %v1277
    %vm1279 = vcmp.lt.s32.totalorder %v1278, 0
    %v1280 = vsub.s32 0, %v1278
    %v1281 = vsel %vm1279, %v1280, %v1278
    %v1282 = vclz %v1281
    %v1283 = vsub.s32 %v1282, 2
    %vm1284 = vcmp.gt.s32.totalorder 0, %v1283
    %v1285 = vsel %vm1284, 0, %v1283
    %v1286 = vsub.s32 32, %v1285
    %v1287 = vshll.u32 %v1278, %v1285
    %v1288 = vshrl.u32 %v1270, %v1286
    %v1289 = vor.u32 %v1287, %v1288
    %v1290 = vsub.s32 4294967266, %v1285
    %v1291 = vadd.s32 %v1290, 127
    %v1292 = vshll.u32 %v1291, 23
    %v1293 = vor.u32 4788187, %v1292
    %v1294 = vand.u32 2147483647, %v1293
    %v1296 = vcvt.s32.f32 %v1289
    %v1297 = vmul.f32 %v1296, %v1294
    %v1298 = vxor.u32 %v1297, 2147483648
    %v1299 = vsel %vm1216, %v1298, %v1297
    %v1300 = vsub.s32 4, %v1276
    %v1301 = vsel %vm1216, %v1300, %v1276
    %v1302 = vsel %vm1215, %v1000, %v1299
    %v1303 = vsel %vm1215, 0, %v1301
    %v1304 = vcosq.f32.pop %v1302
    %v1305 = vsinq.f32.pop %v1302
    %vm1306 = vweird.f32 %v1000
    %v1307 = vadd.s32 %v1303, 3
    %v1308 = vand.u32 %v1307, 3
    %vm1309 = vcmp.lt.s32.totalorder %v1308, 2
    %vm1310 = vcmp.eq.s32.totalorder %v1308, 0
    %v1311 = vxor.u32 %v1305, 2147483648
    %v1312 = vsel %vm1310, %v1304, %v1311
    %vm1313 = vcmp.eq.s32.totalorder %v1308, 2
    %v1314 = vxor.u32 %v1304, 2147483648
    %v1315 = vsel %vm1313, %v1314, %v1305
    %v1316 = vsel %vm1309, %v1312, %v1315
    %v1317 = vsel %vm1306, nan, %v1316
    %v1318 = vand.u32 2147483647, %v1001
    %vm1319 = vcmp.le.f32.partialorder %v1318, 0.7853982
    %vm1320 = vcmp.lt.s32.totalorder %v1001, 0
    %v1321 = vand.u32 %v1001, 2139095040
    %v1322 = vshrl.u32 %v1321, 23
    %v1323 = vsub.s32 %v1322, 127
    %v1324 = vand.u32 2147483647, %v1001
    %v1325 = vand.u32 %v1324, 8388607
    %v1326 = vor.u32 %v1325, 8388608
    %v1327 = vsub.s32 0, %v1326
    %v1328 = vadd.s32 %v1323, 1
    %vm1329 = vcmp.gt.s32.totalorder %v1328, 0
    %v1330 = vsel %vm1329, %v1328, 0
    %v1331 = vshrl.u32 %v1330, 5
    %v1332 = vand.u32 %v1330, 31
    %v1333 = vsub.s32 32, %v1332
    %v1334 = vshrl.u32 683565275, %v1333
    %v1335 = vshll.u32 683565275, %v1332
    %v1336 = vshrl.u32 2475754826, %v1333
    %v1337 = vor.u32 %v1335, %v1336
    %v1338 = vshll.u32 2475754826, %v1332
    %v1339 = vshrl.u32 2131351028, %v1333
    %v1340 = vor.u32 %v1338, %v1339
    %v1341 = vshll.u32 2131351028, %v1332
    %v1342 = vshrl.u32 2102212464, %v1333
    %v1343 = vor.u32 %v1341, %v1342
    %v1344 = vshll.u32 2102212464, %v1332
    %v1345 = vshrl.u32 920167782, %v1333
    %v1346 = vor.u32 %v1344, %v1345
    %v1347 = vshll.u32 920167782, %v1332
    %v1348 = vshrl.u32 1326507024, %v1333
    %v1349 = vor.u32 %v1347, %v1348
    %vm1350 = vcmp.lt.s32.totalorder %v1331, 1
    %vm1351 = vcmp.lt.s32.totalorder %v1331, 2
    %vm1352 = vcmp.lt.s32.totalorder %v1331, 3
    %vm1353 = vcmp.lt.s32.totalorder %v1331, 4
    %v1354 = vsel %vm1350, %v1334, %v1337
    %v1355 = vsel %vm1353, %v1343, 2102212464
    %v1356 = vsel %vm1352, %v1340, %v1355
    %v1357 = vsel %vm1351, %v1354, %v1356
    %v1358 = vsel %vm1350, %v1337, %v1340
    %v1359 = vsel %vm1353, %v1346, 920167782
    %v1360 = vsel %vm1352, %v1343, %v1359
    %v1361 = vsel %vm1351, %v1358, %v1360
    %v1362 = vsel %vm1350, %v1340, %v1343
    %v1363 = vsel %vm1353, %v1349, 1326507024
    %v1364 = vsel %vm1352, %v1346, %v1363
    %v1365 = vsel %vm1351, %v1362, %v1364
    %v1366 = vshll.u32 %v1326, 8
    %v1367 = vmul.u32.u64.compose %v1366, %v1365
    %v1368 = vextract.low.u32 %v1367
    %v1369 = vextract.high.u32 %v1367
    %v1370 = vmul.u32.u64.compose %v1366, %v1361
    %v1371 = vextract.low.u32 %v1370
    %v1372 = vextract.high.u32 %v1370
    %v1373 = vmul.u32 %v1366, %v1357
    %v1374 = vadd.s32 %v1369, %v1371
    %vm1375 = vc.u32 %v1369, %v1371
    %v1376 = vadd.s32 %v1372, 1
    %v1377 = vsel %vm1375, %v1376, %v1372
    %v1378 = vadd.s32 %v1373, %v1377
    %v1379 = vadd.s32 %v1378, 536870912
    %v1380 = vshrl.u32 %v1379, 30
    %v1381 = vshll.u32 %v1380, 30
    %v1382 = vsub.s32 %v1378, %v1381
    %vm1383 = vcmp.lt.s32.totalorder %v1382, 0
    %v1384 = vsub.s32 0, %v1382
    %v1385 = vsel %vm1383, %v1384, %v1382
    %v1386 = vclz %v1385
    %v1387 = vsub.s32 %v1386, 2
    %vm1388 = vcmp.gt.s32.totalorder 0, %v1387
    %v1389 = vsel %vm1388, 0, %v1387
    %v1390 = vsub.s32 32, %v1389
    %v1391 = vshll.u32 %v1382, %v1389
    %v1392 = vshrl.u32 %v1374, %v1390
    %v1393 = vor.u32 %v1391, %v1392
    %v1394 = vsub.s32 4294967266, %v1389
    %v1395 = vadd.s32 %v1394, 127
    %v1396 = vshll.u32 %v1395, 23
    %v1397 = vor.u32 4788187, %v1396
    %v1398 = vand.u32 2147483647, %v1397
    %v1400 = vcvt.s32.f32 %v1393
    %v1401 = vmul.f32 %v1400, %v1398
    %v1402 = vxor.u32 %v1401, 2147483648
    %v1403 = vsel %vm1320, %v1402, %v1401
    %v1404 = vsub.s32 4, %v1380
    %v1405 = vsel %vm1320, %v1404, %v1380
    %v1406 = vsel %vm1319, %v1001, %v1403
    %v1407 = vsel %vm1319, 0, %v1405
    %v1408 = vcosq.f32.pop %v1406
    %v1409 = vsinq.f32.pop %v1406
    %vm1410 = vweird.f32 %v1001
    %v1411 = vadd.s32 %v1407, 3
    %v1412 = vand.u32 %v1411, 3
    %vm1413 = vcmp.lt.s32.totalorder %v1412, 2
    %vm1414 = vcmp.eq.s32.totalorder %v1412, 0
    %v1415 = vxor.u32 %v1409, 2147483648
    %v1416 = vsel %vm1414, %v1408, %v1415
    %vm1417 = vcmp.eq.s32.totalorder %v1412, 2
    %v1418 = vxor.u32 %v1408, 2147483648
    %v1419 = vsel %vm1417, %v1418, %v1409
    %v1420 = vsel %vm1413, %v1416, %v1419
    %v1421 = vsel %vm1410, nan, %v1420
    %v1422 = vand.u32 2147483647, %v1002
    %vm1423 = vcmp.le.f32.partialorder %v1422, 0.7853982
    %vm1424 = vcmp.lt.s32.totalorder %v1002, 0
    %v1425 = vand.u32 %v1002, 2139095040
    %v1426 = vshrl.u32 %v1425, 23
    %v1427 = vsub.s32 %v1426, 127
    %v1428 = vand.u32 2147483647, %v1002
    %v1429 = vand.u32 %v1428, 8388607
    %v1430 = vor.u32 %v1429, 8388608
    %v1431 = vsub.s32 0, %v1430
    %v1432 = vadd.s32 %v1427, 1
    %vm1433 = vcmp.gt.s32.totalorder %v1432, 0
    %v1434 = vsel %vm1433, %v1432, 0
    %v1435 = vshrl.u32 %v1434, 5
    %v1436 = vand.u32 %v1434, 31
    %v1437 = vsub.s32 32, %v1436
    %v1438 = vshrl.u32 683565275, %v1437
    %v1439 = vshll.u32 683565275, %v1436
    %v1440 = vshrl.u32 2475754826, %v1437
    %v1441 = vor.u32 %v1439, %v1440
    %v1442 = vshll.u32 2475754826, %v1436
    %v1443 = vshrl.u32 2131351028, %v1437
    %v1444 = vor.u32 %v1442, %v1443
    %v1445 = vshll.u32 2131351028, %v1436
    %v1446 = vshrl.u32 2102212464, %v1437
    %v1447 = vor.u32 %v1445, %v1446
    %v1448 = vshll.u32 2102212464, %v1436
    %v1449 = vshrl.u32 920167782, %v1437
    %v1450 = vor.u32 %v1448, %v1449
    %v1451 = vshll.u32 920167782, %v1436
    %v1452 = vshrl.u32 1326507024, %v1437
    %v1453 = vor.u32 %v1451, %v1452
    %vm1454 = vcmp.lt.s32.totalorder %v1435, 1
    %vm1455 = vcmp.lt.s32.totalorder %v1435, 2
    %vm1456 = vcmp.lt.s32.totalorder %v1435, 3
    %vm1457 = vcmp.lt.s32.totalorder %v1435, 4
    %v1458 = vsel %vm1454, %v1438, %v1441
    %v1459 = vsel %vm1457, %v1447, 2102212464
    %v1460 = vsel %vm1456, %v1444, %v1459
    %v1461 = vsel %vm1455, %v1458, %v1460
    %v1462 = vsel %vm1454, %v1441, %v1444
    %v1463 = vsel %vm1457, %v1450, 920167782
    %v1464 = vsel %vm1456, %v1447, %v1463
    %v1465 = vsel %vm1455, %v1462, %v1464
    %v1466 = vsel %vm1454, %v1444, %v1447
    %v1467 = vsel %vm1457, %v1453, 1326507024
    %v1468 = vsel %vm1456, %v1450, %v1467
    %v1469 = vsel %vm1455, %v1466, %v1468
    %v1470 = vshll.u32 %v1430, 8
    %v1471 = vmul.u32.u64.compose %v1470, %v1469
    %v1472 = vextract.low.u32 %v1471
    %v1473 = vextract.high.u32 %v1471
    %v1474 = vmul.u32.u64.compose %v1470, %v1465
    %v1475 = vextract.low.u32 %v1474
    %v1476 = vextract.high.u32 %v1474
    %v1477 = vmul.u32 %v1470, %v1461
    %v1478 = vadd.s32 %v1473, %v1475
    %vm1479 = vc.u32 %v1473, %v1475
    %v1480 = vadd.s32 %v1476, 1
    %v1481 = vsel %vm1479, %v1480, %v1476
    %v1482 = vadd.s32 %v1477, %v1481
    %v1483 = vadd.s32 %v1482, 536870912
    %v1484 = vshrl.u32 %v1483, 30
    %v1485 = vshll.u32 %v1484, 30
    %v1486 = vsub.s32 %v1482, %v1485
    %vm1487 = vcmp.lt.s32.totalorder %v1486, 0
    %v1488 = vsub.s32 0, %v1486
    %v1489 = vsel %vm1487, %v1488, %v1486
    %v1490 = vclz %v1489
    %v1491 = vsub.s32 %v1490, 2
    %vm1492 = vcmp.gt.s32.totalorder 0, %v1491
    %v1493 = vsel %vm1492, 0, %v1491
    %v1494 = vsub.s32 32, %v1493
    %v1495 = vshll.u32 %v1486, %v1493
    %v1496 = vshrl.u32 %v1478, %v1494
    %v1497 = vor.u32 %v1495, %v1496
    %v1498 = vsub.s32 4294967266, %v1493
    %v1499 = vadd.s32 %v1498, 127
    %v1500 = vshll.u32 %v1499, 23
    %v1501 = vor.u32 4788187, %v1500
    %v1502 = vand.u32 2147483647, %v1501
    %v1504 = vcvt.s32.f32 %v1497
    %v1505 = vmul.f32 %v1504, %v1502
    %v1506 = vxor.u32 %v1505, 2147483648
    %v1507 = vsel %vm1424, %v1506, %v1505
    %v1508 = vsub.s32 4, %v1484
    %v1509 = vsel %vm1424, %v1508, %v1484
    %v1510 = vsel %vm1423, %v1002, %v1507
    %v1511 = vsel %vm1423, 0, %v1509
    %v1512 = vcosq.f32.pop %v1510
    %v1513 = vsinq.f32.pop %v1510
    %vm1514 = vweird.f32 %v1002
    %v1515 = vadd.s32 %v1511, 3
    %v1516 = vand.u32 %v1515, 3
    %vm1517 = vcmp.lt.s32.totalorder %v1516, 2
    %vm1518 = vcmp.eq.s32.totalorder %v1516, 0
    %v1519 = vxor.u32 %v1513, 2147483648
    %v1520 = vsel %vm1518, %v1512, %v1519
    %vm1521 = vcmp.eq.s32.totalorder %v1516, 2
    %v1522 = vxor.u32 %v1512, 2147483648
    %v1523 = vsel %vm1521, %v1522, %v1513
    %v1524 = vsel %vm1517, %v1520, %v1523
    %v1525 = vsel %vm1514, nan, %v1524
    %v1526 = vand.u32 2147483647, %v1003
    %vm1527 = vcmp.le.f32.partialorder %v1526, 0.7853982
    %vm1528 = vcmp.lt.s32.totalorder %v1003, 0
    %v1529 = vand.u32 %v1003, 2139095040
    %v1530 = vshrl.u32 %v1529, 23
    %v1531 = vsub.s32 %v1530, 127
    %v1532 = vand.u32 2147483647, %v1003
    %v1533 = vand.u32 %v1532, 8388607
    %v1534 = vor.u32 %v1533, 8388608
    %v1535 = vsub.s32 0, %v1534
    %v1536 = vadd.s32 %v1531, 1
    %vm1537 = vcmp.gt.s32.totalorder %v1536, 0
    %v1538 = vsel %vm1537, %v1536, 0
    %v1539 = vshrl.u32 %v1538, 5
    %v1540 = vand.u32 %v1538, 31
    %v1541 = vsub.s32 32, %v1540
    %v1542 = vshrl.u32 683565275, %v1541
    %v1543 = vshll.u32 683565275, %v1540
    %v1544 = vshrl.u32 2475754826, %v1541
    %v1545 = vor.u32 %v1543, %v1544
    %v1546 = vshll.u32 2475754826, %v1540
    %v1547 = vshrl.u32 2131351028, %v1541
    %v1548 = vor.u32 %v1546, %v1547
    %v1549 = vshll.u32 2131351028, %v1540
    %v1550 = vshrl.u32 2102212464, %v1541
    %v1551 = vor.u32 %v1549, %v1550
    %v1552 = vshll.u32 2102212464, %v1540
    %v1553 = vshrl.u32 920167782, %v1541
    %v1554 = vor.u32 %v1552, %v1553
    %v1555 = vshll.u32 920167782, %v1540
    %v1556 = vshrl.u32 1326507024, %v1541
    %v1557 = vor.u32 %v1555, %v1556
    %vm1558 = vcmp.lt.s32.totalorder %v1539, 1
    %vm1559 = vcmp.lt.s32.totalorder %v1539, 2
    %vm1560 = vcmp.lt.s32.totalorder %v1539, 3
    %vm1561 = vcmp.lt.s32.totalorder %v1539, 4
    %v1562 = vsel %vm1558, %v1542, %v1545
    %v1563 = vsel %vm1561, %v1551, 2102212464
    %v1564 = vsel %vm1560, %v1548, %v1563
    %v1565 = vsel %vm1559, %v1562, %v1564
    %v1566 = vsel %vm1558, %v1545, %v1548
    %v1567 = vsel %vm1561, %v1554, 920167782
    %v1568 = vsel %vm1560, %v1551, %v1567
    %v1569 = vsel %vm1559, %v1566, %v1568
    %v1570 = vsel %vm1558, %v1548, %v1551
    %v1571 = vsel %vm1561, %v1557, 1326507024
    %v1572 = vsel %vm1560, %v1554, %v1571
    %v1573 = vsel %vm1559, %v1570, %v1572
    %v1574 = vshll.u32 %v1534, 8
    %v1575 = vmul.u32.u64.compose %v1574, %v1573
    %v1576 = vextract.low.u32 %v1575
    %v1577 = vextract.high.u32 %v1575
    %v1578 = vmul.u32.u64.compose %v1574, %v1569
    %v1579 = vextract.low.u32 %v1578
    %v1580 = vextract.high.u32 %v1578
    %v1581 = vmul.u32 %v1574, %v1565
    %v1582 = vadd.s32 %v1577, %v1579
    %vm1583 = vc.u32 %v1577, %v1579
    %v1584 = vadd.s32 %v1580, 1
    %v1585 = vsel %vm1583, %v1584, %v1580
    %v1586 = vadd.s32 %v1581, %v1585
    %v1587 = vadd.s32 %v1586, 536870912
    %v1588 = vshrl.u32 %v1587, 30
    %v1589 = vshll.u32 %v1588, 30
    %v1590 = vsub.s32 %v1586, %v1589
    %vm1591 = vcmp.lt.s32.totalorder %v1590, 0
    %v1592 = vsub.s32 0, %v1590
    %v1593 = vsel %vm1591, %v1592, %v1590
    %v1594 = vclz %v1593
    %v1595 = vsub.s32 %v1594, 2
    %vm1596 = vcmp.gt.s32.totalorder 0, %v1595
    %v1597 = vsel %vm1596, 0, %v1595
    %v1598 = vsub.s32 32, %v1597
    %v1599 = vshll.u32 %v1590, %v1597
    %v1600 = vshrl.u32 %v1582, %v1598
    %v1601 = vor.u32 %v1599, %v1600
    %v1602 = vsub.s32 4294967266, %v1597
    %v1603 = vadd.s32 %v1602, 127
    %v1604 = vshll.u32 %v1603, 23
    %v1605 = vor.u32 4788187, %v1604
    %v1606 = vand.u32 2147483647, %v1605
    %v1608 = vcvt.s32.f32 %v1601
    %v1609 = vmul.f32 %v1608, %v1606
    %v1610 = vxor.u32 %v1609, 2147483648
    %v1611 = vsel %vm1528, %v1610, %v1609
    %v1612 = vsub.s32 4, %v1588
    %v1613 = vsel %vm1528, %v1612, %v1588
    %v1614 = vsel %vm1527, %v1003, %v1611
    %v1615 = vsel %vm1527, 0, %v1613
    %v1616 = vcosq.f32.pop %v1614
    %v1617 = vsinq.f32.pop %v1614
    %vm1618 = vweird.f32 %v1003
    %v1619 = vadd.s32 %v1615, 3
    %v1620 = vand.u32 %v1619, 3
    %vm1621 = vcmp.lt.s32.totalorder %v1620, 2
    %vm1622 = vcmp.eq.s32.totalorder %v1620, 0
    %v1623 = vxor.u32 %v1617, 2147483648
    %v1624 = vsel %vm1622, %v1616, %v1623
    %vm1625 = vcmp.eq.s32.totalorder %v1620, 2
    %v1626 = vxor.u32 %v1616, 2147483648
    %v1627 = vsel %vm1625, %v1626, %v1617
    %v1628 = vsel %vm1621, %v1624, %v1627
    %v1629 = vsel %vm1618, nan, %v1628
    %v1630 = vand.u32 2147483647, %v1004
    %vm1631 = vcmp.le.f32.partialorder %v1630, 0.7853982
    %vm1632 = vcmp.lt.s32.totalorder %v1004, 0
    %v1633 = vand.u32 %v1004, 2139095040
    %v1634 = vshrl.u32 %v1633, 23
    %v1635 = vsub.s32 %v1634, 127
    %v1636 = vand.u32 2147483647, %v1004
    %v1637 = vand.u32 %v1636, 8388607
    %v1638 = vor.u32 %v1637, 8388608
    %v1639 = vsub.s32 0, %v1638
    %v1640 = vadd.s32 %v1635, 1
    %vm1641 = vcmp.gt.s32.totalorder %v1640, 0
    %v1642 = vsel %vm1641, %v1640, 0
    %v1643 = vshrl.u32 %v1642, 5
    %v1644 = vand.u32 %v1642, 31
    %v1645 = vsub.s32 32, %v1644
    %v1646 = vshrl.u32 683565275, %v1645
    %v1647 = vshll.u32 683565275, %v1644
    %v1648 = vshrl.u32 2475754826, %v1645
    %v1649 = vor.u32 %v1647, %v1648
    %v1650 = vshll.u32 2475754826, %v1644
    %v1651 = vshrl.u32 2131351028, %v1645
    %v1652 = vor.u32 %v1650, %v1651
    %v1653 = vshll.u32 2131351028, %v1644
    %v1654 = vshrl.u32 2102212464, %v1645
    %v1655 = vor.u32 %v1653, %v1654
    %v1656 = vshll.u32 2102212464, %v1644
    %v1657 = vshrl.u32 920167782, %v1645
    %v1658 = vor.u32 %v1656, %v1657
    %v1659 = vshll.u32 920167782, %v1644
    %v1660 = vshrl.u32 1326507024, %v1645
    %v1661 = vor.u32 %v1659, %v1660
    %vm1662 = vcmp.lt.s32.totalorder %v1643, 1
    %vm1663 = vcmp.lt.s32.totalorder %v1643, 2
    %vm1664 = vcmp.lt.s32.totalorder %v1643, 3
    %vm1665 = vcmp.lt.s32.totalorder %v1643, 4
    %v1666 = vsel %vm1662, %v1646, %v1649
    %v1667 = vsel %vm1665, %v1655, 2102212464
    %v1668 = vsel %vm1664, %v1652, %v1667
    %v1669 = vsel %vm1663, %v1666, %v1668
    %v1670 = vsel %vm1662, %v1649, %v1652
    %v1671 = vsel %vm1665, %v1658, 920167782
    %v1672 = vsel %vm1664, %v1655, %v1671
    %v1673 = vsel %vm1663, %v1670, %v1672
    %v1674 = vsel %vm1662, %v1652, %v1655
    %v1675 = vsel %vm1665, %v1661, 1326507024
    %v1676 = vsel %vm1664, %v1658, %v1675
    %v1677 = vsel %vm1663, %v1674, %v1676
    %v1678 = vshll.u32 %v1638, 8
    %v1679 = vmul.u32.u64.compose %v1678, %v1677
    %v1680 = vextract.low.u32 %v1679
    %v1681 = vextract.high.u32 %v1679
    %v1682 = vmul.u32.u64.compose %v1678, %v1673
    %v1683 = vextract.low.u32 %v1682
    %v1684 = vextract.high.u32 %v1682
    %v1685 = vmul.u32 %v1678, %v1669
    %v1686 = vadd.s32 %v1681, %v1683
    %vm1687 = vc.u32 %v1681, %v1683
    %v1688 = vadd.s32 %v1684, 1
    %v1689 = vsel %vm1687, %v1688, %v1684
    %v1690 = vadd.s32 %v1685, %v1689
    %v1691 = vadd.s32 %v1690, 536870912
    %v1692 = vshrl.u32 %v1691, 30
    %v1693 = vshll.u32 %v1692, 30
    %v1694 = vsub.s32 %v1690, %v1693
    %vm1695 = vcmp.lt.s32.totalorder %v1694, 0
    %v1696 = vsub.s32 0, %v1694
    %v1697 = vsel %vm1695, %v1696, %v1694
    %v1698 = vclz %v1697
    %v1699 = vsub.s32 %v1698, 2
    %vm1700 = vcmp.gt.s32.totalorder 0, %v1699
    %v1701 = vsel %vm1700, 0, %v1699
    %v1702 = vsub.s32 32, %v1701
    %v1703 = vshll.u32 %v1694, %v1701
    %v1704 = vshrl.u32 %v1686, %v1702
    %v1705 = vor.u32 %v1703, %v1704
    %v1706 = vsub.s32 4294967266, %v1701
    %v1707 = vadd.s32 %v1706, 127
    %v1708 = vshll.u32 %v1707, 23
    %v1709 = vor.u32 4788187, %v1708
    %v1710 = vand.u32 2147483647, %v1709
    %v1712 = vcvt.s32.f32 %v1705
    %v1713 = vmul.f32 %v1712, %v1710
    %v1714 = vxor.u32 %v1713, 2147483648
    %v1715 = vsel %vm1632, %v1714, %v1713
    %v1716 = vsub.s32 4, %v1692
    %v1717 = vsel %vm1632, %v1716, %v1692
    %v1718 = vsel %vm1631, %v1004, %v1715
    %v1719 = vsel %vm1631, 0, %v1717
    %v1720 = vcosq.f32.pop %v1718
    %v1721 = vsinq.f32.pop %v1718
    %vm1722 = vweird.f32 %v1004
    %v1723 = vadd.s32 %v1719, 3
    %v1724 = vand.u32 %v1723, 3
    %vm1725 = vcmp.lt.s32.totalorder %v1724, 2
    %vm1726 = vcmp.eq.s32.totalorder %v1724, 0
    %v1727 = vxor.u32 %v1721, 2147483648
    %v1728 = vsel %vm1726, %v1720, %v1727
    %vm1729 = vcmp.eq.s32.totalorder %v1724, 2
    %v1730 = vxor.u32 %v1720, 2147483648
    %v1731 = vsel %vm1729, %v1730, %v1721
    %v1732 = vsel %vm1725, %v1728, %v1731
    %v1733 = vsel %vm1722, nan, %v1732
    %v1734 = vand.u32 2147483647, %v1005
    %vm1735 = vcmp.le.f32.partialorder %v1734, 0.7853982
    %vm1736 = vcmp.lt.s32.totalorder %v1005, 0
    %v1737 = vand.u32 %v1005, 2139095040
    %v1738 = vshrl.u32 %v1737, 23
    %v1739 = vsub.s32 %v1738, 127
    %v1740 = vand.u32 2147483647, %v1005
    %v1741 = vand.u32 %v1740, 8388607
    %v1742 = vor.u32 %v1741, 8388608
    %v1743 = vsub.s32 0, %v1742
    %v1744 = vadd.s32 %v1739, 1
    %vm1745 = vcmp.gt.s32.totalorder %v1744, 0
    %v1746 = vsel %vm1745, %v1744, 0
    %v1747 = vshrl.u32 %v1746, 5
    %v1748 = vand.u32 %v1746, 31
    %v1749 = vsub.s32 32, %v1748
    %v1750 = vshrl.u32 683565275, %v1749
    %v1751 = vshll.u32 683565275, %v1748
    %v1752 = vshrl.u32 2475754826, %v1749
    %v1753 = vor.u32 %v1751, %v1752
    %v1754 = vshll.u32 2475754826, %v1748
    %v1755 = vshrl.u32 2131351028, %v1749
    %v1756 = vor.u32 %v1754, %v1755
    %v1757 = vshll.u32 2131351028, %v1748
    %v1758 = vshrl.u32 2102212464, %v1749
    %v1759 = vor.u32 %v1757, %v1758
    %v1760 = vshll.u32 2102212464, %v1748
    %v1761 = vshrl.u32 920167782, %v1749
    %v1762 = vor.u32 %v1760, %v1761
    %v1763 = vshll.u32 920167782, %v1748
    %v1764 = vshrl.u32 1326507024, %v1749
    %v1765 = vor.u32 %v1763, %v1764
    %vm1766 = vcmp.lt.s32.totalorder %v1747, 1
    %vm1767 = vcmp.lt.s32.totalorder %v1747, 2
    %vm1768 = vcmp.lt.s32.totalorder %v1747, 3
    %vm1769 = vcmp.lt.s32.totalorder %v1747, 4
    %v1770 = vsel %vm1766, %v1750, %v1753
    %v1771 = vsel %vm1769, %v1759, 2102212464
    %v1772 = vsel %vm1768, %v1756, %v1771
    %v1773 = vsel %vm1767, %v1770, %v1772
    %v1774 = vsel %vm1766, %v1753, %v1756
    %v1775 = vsel %vm1769, %v1762, 920167782
    %v1776 = vsel %vm1768, %v1759, %v1775
    %v1777 = vsel %vm1767, %v1774, %v1776
    %v1778 = vsel %vm1766, %v1756, %v1759
    %v1779 = vsel %vm1769, %v1765, 1326507024
    %v1780 = vsel %vm1768, %v1762, %v1779
    %v1781 = vsel %vm1767, %v1778, %v1780
    %v1782 = vshll.u32 %v1742, 8
    %v1783 = vmul.u32.u64.compose %v1782, %v1781
    %v1784 = vextract.low.u32 %v1783
    %v1785 = vextract.high.u32 %v1783
    %v1786 = vmul.u32.u64.compose %v1782, %v1777
    %v1787 = vextract.low.u32 %v1786
    %v1788 = vextract.high.u32 %v1786
    %v1789 = vmul.u32 %v1782, %v1773
    %v1790 = vadd.s32 %v1785, %v1787
    %vm1791 = vc.u32 %v1785, %v1787
    %v1792 = vadd.s32 %v1788, 1
    %v1793 = vsel %vm1791, %v1792, %v1788
    %v1794 = vadd.s32 %v1789, %v1793
    %v1795 = vadd.s32 %v1794, 536870912
    %v1796 = vshrl.u32 %v1795, 30
    %v1797 = vshll.u32 %v1796, 30
    %v1798 = vsub.s32 %v1794, %v1797
    %vm1799 = vcmp.lt.s32.totalorder %v1798, 0
    %v1800 = vsub.s32 0, %v1798
    %v1801 = vsel %vm1799, %v1800, %v1798
    %v1802 = vclz %v1801
    %v1803 = vsub.s32 %v1802, 2
    %vm1804 = vcmp.gt.s32.totalorder 0, %v1803
    %v1805 = vsel %vm1804, 0, %v1803
    %v1806 = vsub.s32 32, %v1805
    %v1807 = vshll.u32 %v1798, %v1805
    %v1808 = vshrl.u32 %v1790, %v1806
    %v1809 = vor.u32 %v1807, %v1808
    %v1810 = vsub.s32 4294967266, %v1805
    %v1811 = vadd.s32 %v1810, 127
    %v1812 = vshll.u32 %v1811, 23
    %v1813 = vor.u32 4788187, %v1812
    %v1814 = vand.u32 2147483647, %v1813
    %v1816 = vcvt.s32.f32 %v1809
    %v1817 = vmul.f32 %v1816, %v1814
    %v1818 = vxor.u32 %v1817, 2147483648
    %v1819 = vsel %vm1736, %v1818, %v1817
    %v1820 = vsub.s32 4, %v1796
    %v1821 = vsel %vm1736, %v1820, %v1796
    %v1822 = vsel %vm1735, %v1005, %v1819
    %v1823 = vsel %vm1735, 0, %v1821
    %v1824 = vcosq.f32.pop %v1822
    %v1825 = vsinq.f32.pop %v1822
    %vm1826 = vweird.f32 %v1005
    %v1827 = vadd.s32 %v1823, 3
    %v1828 = vand.u32 %v1827, 3
    %vm1829 = vcmp.lt.s32.totalorder %v1828, 2
    %vm1830 = vcmp.eq.s32.totalorder %v1828, 0
    %v1831 = vxor.u32 %v1825, 2147483648
    %v1832 = vsel %vm1830, %v1824, %v1831
    %vm1833 = vcmp.eq.s32.totalorder %v1828, 2
    %v1834 = vxor.u32 %v1824, 2147483648
    %v1835 = vsel %vm1833, %v1834, %v1825
    %v1836 = vsel %vm1829, %v1832, %v1835
    %v1837 = vsel %vm1826, nan, %v1836
    %1838 = vst [vmem:[#allocation2 + $0x40] sm:$0xff] %v1109
    %1839 = vst [vmem:[#allocation2 + $0x48] sm:$0xff] %v1213
    %1840 = vst [vmem:[#allocation2 + $0x50] sm:$0xff] %v1317
    %1841 = vst [vmem:[#allocation2 + $0x58] sm:$0xff] %v1421
    %1842 = vst [vmem:[#allocation2 + $0x60] sm:$0xff] %v1525
    %1843 = vst [vmem:[#allocation2 + $0x68] sm:$0xff] %v1629
    %1844 = vst [vmem:[#allocation2 + $0x70] sm:$0xff] %v1733
    %1845 = vst [vmem:[#allocation2 + $0x78] sm:$0xff] %v1837
    // Predicated region
    $region10: #{tpu_custom_call.1} parent=1 // pred_check
      _
    $region11: #{tpu_custom_call.1} parent=1 // pred_check_branch
      %1847 = sbr.rel (0) target = $region13
    $region12: #{tpu_custom_call.1} parent=1 // pred_region
      %s1849 = ssub.s32 2048, 2048
      %1850 = vsyncadd [#allocation3], %s1849
      %s1851 = sshll.u32 [#allocation2], 4
      %s1852 = int_to_ptr.vmem [resolvable:$true] %s1851
      %1857 = dma.vmem_to_hbm [thread:$0]  %s1852, 2048, %s2, [#allocation3], 256, 256, 16
    $region13: #{tpu_custom_call.1} parent=1 // pred_fallthru
      _
    // Predicated region
    $region14: #{tpu_custom_call.1} parent=1 // pred_check
      _
    $region15: #{tpu_custom_call.1} parent=1 // pred_check_branch
      %1859 = sbr.rel (0) target = $region17
    $region16: #{tpu_custom_call.1} parent=1 // pred_region
      %1860 = dma.done [#allocation3], 2048
    $region17: #{tpu_custom_call.1} parent=1 // pred_fallthru
      _
    %1861 = vsyncpa [#allocation3], 1

</llo_original>
